<compile_context>
chip_gen: v5e
topology: v5e:2x2
jax: 0.10.0
libtpu: 0.0.40
codegen_flags: <defaults>
</compile_context>

<pallas_src>
import functools

import jax
import jax.numpy as jnp
from jax.experimental import pallas as pl
from jax.experimental.pallas import tpu as pltpu  # noqa: F401  (TPU backend)


def _full_spec(shape):
    # single-block spec: block == whole array (everything here is tiny)
    return pl.BlockSpec(shape, lambda *_: (0,) * len(shape))


# --------------------------- in-kernel helpers -----------------------------

def _layernorm(x, g, b, eps=1e-12):
    mu = jnp.mean(x, axis=-1, keepdims=True)
    var = jnp.mean(jnp.square(x - mu), axis=-1, keepdims=True)
    return (x - mu) * jax.lax.rsqrt(var + eps) * g + b


def _erf(x):
    # Abramowitz & Stegun 7.1.26, |err| < 1.5e-7 (f32-exact).  Used so the
    # exact-GELU (erf) form never depends on an erf lowering in Mosaic.
    a1, a2, a3, a4, a5 = (0.254829592, -0.284496736, 1.421413741,
                          -1.453152027, 1.061405429)
    p = 0.3275911
    ax = jnp.abs(x)
    t = 1.0 / (1.0 + p * ax)
    poly = ((((a5 * t + a4) * t + a3) * t + a2) * t + a1) * t
    y = 1.0 - poly * jnp.exp(-ax * ax)
    return jnp.where(x >= 0, y, -y)


def _gelu_exact(x):
    return 0.5 * x * (1.0 + _erf(x * 0.7071067811865476))


# ------------------------- fully fused BERT kernel -------------------------

def _fused_bert_kernel(emb_ref, mask_ref, eg_ref, eb_ref,
                       wqkv_ref, bqkv_ref, wo_ref, bo_ref, g1_ref, b1_ref,
                       wi_ref, bi_ref, wo2_ref, bo2_ref, g2_ref, b2_ref,
                       pw_ref, pb_ref, out_ref,
                       *, layers, heads, batch, seq):
    f32 = jnp.float32
    h = emb_ref.shape[-1]
    dh = h // heads

    # embedding LayerNorm (no residual, no zeros tensor)
    x = _layernorm(emb_ref[...], eg_ref[...], eb_ref[...])            # (B*S, H)

    # additive attention bias rebuilt in-kernel from the (B, S) mask
    add_bias = (1.0 - mask_ref[...]) * (-1e9)                          # (B, S)

    for l in range(layers):
        wqkv = wqkv_ref[l]                                             # (H, 3H)
        bqkv = bqkv_ref[l]                                             # (1, 3H)
        wo = wo_ref[l]                                                 # (H, H)
        wi = wi_ref[l]                                                 # (H, I)
        wo2 = wo2_ref[l]                                               # (I, H)

        # fused Q/K/V projection: one MXU matmul (1/sqrt(dh) folded into Wq)
        qkv = jnp.dot(x, wqkv, preferred_element_type=f32) + bqkv      # (B*S, 3H)

        # multi-head attention: (batch, head) statically unrolled on 2-D
        # (S, dh) slabs; the output projection is folded per-head
        # (ctx_h @ Wo[h-rows]) so no head concat / transpose is ever needed.
        attn_blocks = []
        for b in range(batch):
            rows = slice(b * seq, (b + 1) * seq)
            bias_b = add_bias[b:b + 1, :]                              # (1, S)
            attn_b = None
            for hd in range(heads):
                q = qkv[rows, hd * dh:(hd + 1) * dh]                   # (S, dh)
                k = qkv[rows, h + hd * dh:h + (hd + 1) * dh]           # (S, dh)
                v = qkv[rows, 2 * h + hd * dh:2 * h + (hd + 1) * dh]   # (S, dh)
                s = jnp.einsum("qd,kd->qk", q, k,
                               preferred_element_type=f32) + bias_b    # (S, S)
                s = s - jnp.max(s, axis=-1, keepdims=True)
                p = jnp.exp(s)
                p = p * pl.reciprocal(jnp.sum(p, axis=-1, keepdims=True),
                                      approx=True)
                ctx = jnp.dot(p, v, preferred_element_type=f32)        # (S, dh)
                contrib = jnp.dot(ctx, wo[hd * dh:(hd + 1) * dh, :],
                                  preferred_element_type=f32)          # (S, H)
                attn_b = contrib if attn_b is None else attn_b + contrib
            attn_blocks.append(attn_b)
        attn = jnp.concatenate(attn_blocks, axis=0) + bo_ref[l]        # (B*S, H)

        # residual + LN, FFN (exact GELU), residual + LN — all VMEM resident
        x = _layernorm(attn + x, g1_ref[l], b1_ref[l])
        ffn = _gelu_exact(jnp.dot(x, wi, preferred_element_type=f32) + bi_ref[l])
        ffn = jnp.dot(ffn, wo2, preferred_element_type=f32) + bo2_ref[l]
        x = _layernorm(ffn + x, g2_ref[l], b2_ref[l])

    # pooler: tanh(W @ CLS + b) read straight from the VMEM-resident activation
    pw = pw_ref[...]
    pb = pb_ref[...]
    for b in range(batch):
        cls_b = x[b * seq:b * seq + 1, :]                              # (1, H)
        pooled_b = jnp.tanh(jnp.dot(cls_b, pw, preferred_element_type=f32) + pb)
        out_ref[b:b + 1, :] = pooled_b.astype(out_ref.dtype)


# ------------------------ synthetic BERT parameters ------------------------

class Config:
    vocab_size = 100
    hidden = 32
    heads = 2
    layers = 2
    intermediate = 64
    max_pos = 16
    type_vocab = 2


def init_params(key, cfg):
    def nrm(k, shape):
        return jax.random.normal(k, shape, jnp.float32) * 0.02

    h, it, L = cfg.hidden, cfg.intermediate, cfg.layers
    dh = h // cfg.heads
    scale = 1.0 / (dh ** 0.5)                  # attention scale, folded into Wq
    keys = iter(jax.random.split(key, 8 + 8 * L))

    params = {
        "word_emb": nrm(next(keys), (cfg.vocab_size, h)),
        "pos_emb": nrm(next(keys), (cfg.max_pos, h)),
        "type_emb": nrm(next(keys), (cfg.type_vocab, h)),
        "emb_ln_g": jnp.ones((1, h), jnp.float32),
        "emb_ln_b": jnp.zeros((1, h), jnp.float32),
        "pool_w": nrm(next(keys), (h, h)),
        "pool_b": jnp.zeros((1, h), jnp.float32),
    }

    wqkv, bqkv, wo, bo, g1, b1 = [], [], [], [], [], []
    wi, bi, wo2, bo2, g2, b2 = [], [], [], [], [], []
    for _ in range(L):
        wq = nrm(next(keys), (h, h))
        wk = nrm(next(keys), (h, h))
        wv = nrm(next(keys), (h, h))
        wqkv.append(jnp.concatenate([wq * scale, wk, wv], axis=1))   # (H, 3H)
        bqkv.append(jnp.zeros((1, 3 * h), jnp.float32))
        wo.append(nrm(next(keys), (h, h)))
        bo.append(jnp.zeros((1, h), jnp.float32))
        g1.append(jnp.ones((1, h), jnp.float32))
        b1.append(jnp.zeros((1, h), jnp.float32))
        wi.append(nrm(next(keys), (h, it)))
        bi.append(jnp.zeros((1, it), jnp.float32))
        wo2.append(nrm(next(keys), (it, h)))
        bo2.append(jnp.zeros((1, h), jnp.float32))
        g2.append(jnp.ones((1, h), jnp.float32))
        b2.append(jnp.zeros((1, h), jnp.float32))

    for name, lst in [("wqkv", wqkv), ("bqkv", bqkv), ("wo", wo), ("bo", bo),
                      ("ln1_g", g1), ("ln1_b", b1), ("wi", wi), ("bi", bi),
                      ("wo2", wo2), ("bo2", bo2), ("ln2_g", g2), ("ln2_b", b2)]:
        params[name] = jnp.stack(lst, axis=0)
    return params


# ------------------------------ forward pass -------------------------------

def bert_pooler_output(params, cfg, input_ids, attention_mask):
    b, s = input_ids.shape
    h = cfg.hidden

    # embeddings (table gathers are glue; BERT default token_type_ids = 0)
    pos_ids = jnp.arange(s)
    emb = (params["word_emb"][input_ids]
           + params["pos_emb"][pos_ids][None, :, :]
           + params["type_emb"][0][None, None, :]).reshape(b * s, h)
    mask_f = attention_mask.astype(jnp.float32)                     # (B, S)

    args = (emb, mask_f,
            params["emb_ln_g"], params["emb_ln_b"],
            params["wqkv"], params["bqkv"], params["wo"], params["bo"],
            params["ln1_g"], params["ln1_b"],
            params["wi"], params["bi"], params["wo2"], params["bo2"],
            params["ln2_g"], params["ln2_b"],
            params["pool_w"], params["pool_b"])

    kernel = functools.partial(_fused_bert_kernel, layers=cfg.layers,
                               heads=cfg.heads, batch=b, seq=s)
    return pl.pallas_call(
        kernel,
        out_shape=jax.ShapeDtypeStruct((b, h), jnp.float32),
        in_specs=[_full_spec(a.shape) for a in args],
        out_specs=_full_spec((b, h)),
    )(*args)


def cls_model_forward(params, cfg, input_ids, attention_mask, index):
    # exact CLSModel.forward semantics: (pooler_output, index)
    res = bert_pooler_output(params, cfg, input_ids, attention_mask)
    return (res, index)


# ---------------------------------- main ------------------------------------

if __name__ == "__main__":
    cfg = Config()
    key = jax.random.PRNGKey(0)
    k_params, k_ids = jax.random.split(key)

    params = init_params(k_params, cfg)

    batch, seq = 2, 8
    input_ids = jax.random.randint(k_ids, (batch, seq), 0, cfg.vocab_size,
                                   dtype=jnp.int32)
    attention_mask = jnp.array([[1, 1, 1, 1, 1, 1, 1, 1],
                                [1, 1, 1, 1, 1, 0, 0, 0]], dtype=jnp.int32)
    index = jnp.arange(batch, dtype=jnp.int32)

    fwd = jax.jit(lambda ids, am, idx: cls_model_forward(params, cfg, ids, am, idx))
    res, idx = fwd(input_ids, attention_mask, index)
    jax.block_until_ready(res)
    jax.block_until_ready(idx)

    assert res.shape == (batch, cfg.hidden) and res.dtype == jnp.float32
    assert idx.shape == (batch,)
    print("KERNEL_OK")
</pallas_src>

<mosaic_0001>
module attributes {stable_mosaic.version = 11 : i64} {
  func.func @_fused_bert_kernel(%arg0: memref<16x32xf32, #tpu.memory_space<vmem>>, %arg1: memref<2x8xf32, #tpu.memory_space<vmem>>, %arg2: memref<1x32xf32, #tpu.memory_space<vmem>>, %arg3: memref<1x32xf32, #tpu.memory_space<vmem>>, %arg4: memref<2x32x96xf32, #tpu.memory_space<vmem>>, %arg5: memref<2x1x96xf32, #tpu.memory_space<vmem>>, %arg6: memref<2x32x32xf32, #tpu.memory_space<vmem>>, %arg7: memref<2x1x32xf32, #tpu.memory_space<vmem>>, %arg8: memref<2x1x32xf32, #tpu.memory_space<vmem>>, %arg9: memref<2x1x32xf32, #tpu.memory_space<vmem>>, %arg10: memref<2x32x64xf32, #tpu.memory_space<vmem>>, %arg11: memref<2x1x64xf32, #tpu.memory_space<vmem>>, %arg12: memref<2x64x32xf32, #tpu.memory_space<vmem>>, %arg13: memref<2x1x32xf32, #tpu.memory_space<vmem>>, %arg14: memref<2x1x32xf32, #tpu.memory_space<vmem>>, %arg15: memref<2x1x32xf32, #tpu.memory_space<vmem>>, %arg16: memref<32x32xf32, #tpu.memory_space<vmem>>, %arg17: memref<1x32xf32, #tpu.memory_space<vmem>>, %arg18: memref<2x32xf32, #tpu.memory_space<vmem>>) attributes {dimension_semantics = [], scalar_prefetch = 0 : i64, scratch_operands = 0 : i64, tpu.core_type = #tpu.core_type<tc>} {
    %c0 = arith.constant 0 : index
    %c0_0 = arith.constant 0 : index
    %0 = vector.load %arg0[%c0, %c0_0] : memref<16x32xf32, #tpu.memory_space<vmem>>, vector<16x32xf32>
    %c0_1 = arith.constant 0 : index
    %c0_2 = arith.constant 0 : index
    %1 = vector.load %arg2[%c0_1, %c0_2] : memref<1x32xf32, #tpu.memory_space<vmem>>, vector<1x32xf32>
    %c0_3 = arith.constant 0 : index
    %c0_4 = arith.constant 0 : index
    %2 = vector.load %arg3[%c0_3, %c0_4] : memref<1x32xf32, #tpu.memory_space<vmem>>, vector<1x32xf32>
    %cst = arith.constant dense<0.000000e+00> : vector<16xf32>
    %3 = vector.multi_reduction <add>, %0, %cst [1] : vector<16x32xf32> to vector<16xf32>
    %4 = vector.shape_cast %3 : vector<16xf32> to vector<16x1xf32>
    %cst_5 = arith.constant 3.200000e+01 : f32
    %5 = vector.broadcast %cst_5 : f32 to vector<16x1xf32>
    %6 = arith.divf %4, %5 : vector<16x1xf32>
    %7 = vector.broadcast %6 : vector<16x1xf32> to vector<16x32xf32>
    %8 = arith.subf %0, %7 : vector<16x32xf32>
    %9 = arith.mulf %8, %8 : vector<16x32xf32>
    %cst_6 = arith.constant dense<0.000000e+00> : vector<16xf32>
    %10 = vector.multi_reduction <add>, %9, %cst_6 [1] : vector<16x32xf32> to vector<16xf32>
    %11 = vector.shape_cast %10 : vector<16xf32> to vector<16x1xf32>
    %cst_7 = arith.constant 3.200000e+01 : f32
    %12 = vector.broadcast %cst_7 : f32 to vector<16x1xf32>
    %13 = arith.divf %11, %12 : vector<16x1xf32>
    %14 = vector.broadcast %6 : vector<16x1xf32> to vector<16x32xf32>
    %15 = arith.subf %0, %14 : vector<16x32xf32>
    %cst_8 = arith.constant 9.99999996E-13 : f32
    %16 = vector.broadcast %cst_8 : f32 to vector<16x1xf32>
    %17 = arith.addf %13, %16 : vector<16x1xf32>
    %18 = math.rsqrt %17 : vector<16x1xf32>
    %19 = vector.broadcast %18 : vector<16x1xf32> to vector<16x32xf32>
    %20 = arith.mulf %15, %19 : vector<16x32xf32>
    %21 = vector.broadcast %1 : vector<1x32xf32> to vector<16x32xf32>
    %22 = arith.mulf %20, %21 : vector<16x32xf32>
    %23 = vector.broadcast %2 : vector<1x32xf32> to vector<16x32xf32>
    %24 = arith.addf %22, %23 : vector<16x32xf32>
    %c0_9 = arith.constant 0 : index
    %c0_10 = arith.constant 0 : index
    %25 = vector.load %arg1[%c0_9, %c0_10] : memref<2x8xf32, #tpu.memory_space<vmem>>, vector<2x8xf32>
    %cst_11 = arith.constant 1.000000e+00 : f32
    %26 = vector.broadcast %cst_11 : f32 to vector<2x8xf32>
    %27 = arith.subf %26, %25 : vector<2x8xf32>
    %cst_12 = arith.constant -1.000000e+09 : f32
    %28 = vector.broadcast %cst_12 : f32 to vector<2x8xf32>
    %29 = arith.mulf %27, %28 : vector<2x8xf32>
    %c0_13 = arith.constant 0 : index
    %c0_14 = arith.constant 0 : index
    %c0_15 = arith.constant 0 : index
    %30 = vector.load %arg4[%c0_13, %c0_14, %c0_15] : memref<2x32x96xf32, #tpu.memory_space<vmem>>, vector<1x32x96xf32>
    %31 = vector.shape_cast %30 : vector<1x32x96xf32> to vector<32x96xf32>
    %c0_16 = arith.constant 0 : index
    %c0_17 = arith.constant 0 : index
    %c0_18 = arith.constant 0 : index
    %32 = vector.load %arg5[%c0_16, %c0_17, %c0_18] : memref<2x1x96xf32, #tpu.memory_space<vmem>>, vector<1x1x96xf32>
    %33 = vector.shape_cast %32 : vector<1x1x96xf32> to vector<1x96xf32>
    %c0_19 = arith.constant 0 : index
    %c0_20 = arith.constant 0 : index
    %c0_21 = arith.constant 0 : index
    %34 = vector.load %arg6[%c0_19, %c0_20, %c0_21] : memref<2x32x32xf32, #tpu.memory_space<vmem>>, vector<1x32x32xf32>
    %35 = vector.shape_cast %34 : vector<1x32x32xf32> to vector<32x32xf32>
    %c0_22 = arith.constant 0 : index
    %c0_23 = arith.constant 0 : index
    %c0_24 = arith.constant 0 : index
    %36 = vector.load %arg10[%c0_22, %c0_23, %c0_24] : memref<2x32x64xf32, #tpu.memory_space<vmem>>, vector<1x32x64xf32>
    %37 = vector.shape_cast %36 : vector<1x32x64xf32> to vector<32x64xf32>
    %c0_25 = arith.constant 0 : index
    %c0_26 = arith.constant 0 : index
    %c0_27 = arith.constant 0 : index
    %38 = vector.load %arg12[%c0_25, %c0_26, %c0_27] : memref<2x64x32xf32, #tpu.memory_space<vmem>>, vector<1x64x32xf32>
    %39 = vector.shape_cast %38 : vector<1x64x32xf32> to vector<64x32xf32>
    %cst_28 = arith.constant dense<0.000000e+00> : vector<16x96xf32>
    %40 = tpu.matmul %24, %31, %cst_28 {dimension_numbers = #tpu.dot_dimension_numbers<[1], [0], [0], [1], [0, 0, 1, 1], [], []>} : vector<16x32xf32>, vector<32x96xf32>, vector<16x96xf32> -> vector<16x96xf32>
    %41 = vector.broadcast %33 : vector<1x96xf32> to vector<16x96xf32>
    %42 = arith.addf %40, %41 : vector<16x96xf32>
    %43 = vector.extract_strided_slice %29 {offsets = [0, 0], sizes = [1, 8], strides = [1, 1]} : vector<2x8xf32> to vector<1x8xf32>
    %44 = vector.extract_strided_slice %42 {offsets = [0, 0], sizes = [8, 16], strides = [1, 1]} : vector<16x96xf32> to vector<8x16xf32>
    %45 = vector.extract_strided_slice %42 {offsets = [0, 32], sizes = [8, 16], strides = [1, 1]} : vector<16x96xf32> to vector<8x16xf32>
    %46 = vector.extract_strided_slice %42 {offsets = [0, 64], sizes = [8, 16], strides = [1, 1]} : vector<16x96xf32> to vector<8x16xf32>
    "tpu.trace_start"() <{level = 10 : i32, message = "qd,kd->qk"}> : () -> ()
    %cst_29 = arith.constant dense<0.000000e+00> : vector<8x8xf32>
    %47 = tpu.matmul %44, %45, %cst_29 {dimension_numbers = #tpu.dot_dimension_numbers<[1], [1], [0], [0], [0, 0, 1, 0], [], []>} : vector<8x16xf32>, vector<8x16xf32>, vector<8x8xf32> -> vector<8x8xf32>
    "tpu.trace_stop"() : () -> ()
    %48 = vector.broadcast %43 : vector<1x8xf32> to vector<8x8xf32>
    %49 = arith.addf %47, %48 : vector<8x8xf32>
    %cst_30 = arith.constant dense<0xFF800000> : vector<8xf32>
    %50 = vector.multi_reduction <maximumf>, %49, %cst_30 [1] : vector<8x8xf32> to vector<8xf32>
    %51 = vector.shape_cast %50 : vector<8xf32> to vector<8x1xf32>
    %52 = vector.broadcast %51 : vector<8x1xf32> to vector<8x8xf32>
    %53 = arith.subf %49, %52 : vector<8x8xf32>
    %54 = math.exp %53 : vector<8x8xf32>
    %cst_31 = arith.constant dense<0.000000e+00> : vector<8xf32>
    %55 = vector.multi_reduction <add>, %54, %cst_31 [1] : vector<8x8xf32> to vector<8xf32>
    %56 = vector.shape_cast %55 : vector<8xf32> to vector<8x1xf32>
    %57 = tpu.reciprocal %56 {approx = true} : vector<8x1xf32> -> vector<8x1xf32>
    %58 = vector.broadcast %57 : vector<8x1xf32> to vector<8x8xf32>
    %59 = arith.mulf %54, %58 : vector<8x8xf32>
    %cst_32 = arith.constant dense<0.000000e+00> : vector<8x16xf32>
    %60 = tpu.matmul %59, %46, %cst_32 {dimension_numbers = #tpu.dot_dimension_numbers<[1], [0], [0], [1], [0, 0, 1, 1], [], []>} : vector<8x8xf32>, vector<8x16xf32>, vector<8x16xf32> -> vector<8x16xf32>
    %61 = vector.extract_strided_slice %35 {offsets = [0, 0], sizes = [16, 32], strides = [1, 1]} : vector<32x32xf32> to vector<16x32xf32>
    %cst_33 = arith.constant dense<0.000000e+00> : vector<8x32xf32>
    %62 = tpu.matmul %60, %61, %cst_33 {dimension_numbers = #tpu.dot_dimension_numbers<[1], [0], [0], [1], [0, 0, 1, 1], [], []>} : vector<8x16xf32>, vector<16x32xf32>, vector<8x32xf32> -> vector<8x32xf32>
    %63 = vector.extract_strided_slice %42 {offsets = [0, 16], sizes = [8, 16], strides = [1, 1]} : vector<16x96xf32> to vector<8x16xf32>
    %64 = vector.extract_strided_slice %42 {offsets = [0, 48], sizes = [8, 16], strides = [1, 1]} : vector<16x96xf32> to vector<8x16xf32>
    %65 = vector.extract_strided_slice %42 {offsets = [0, 80], sizes = [8, 16], strides = [1, 1]} : vector<16x96xf32> to vector<8x16xf32>
    "tpu.trace_start"() <{level = 10 : i32, message = "qd,kd->qk"}> : () -> ()
    %cst_34 = arith.constant dense<0.000000e+00> : vector<8x8xf32>
    %66 = tpu.matmul %63, %64, %cst_34 {dimension_numbers = #tpu.dot_dimension_numbers<[1], [1], [0], [0], [0, 0, 1, 0], [], []>} : vector<8x16xf32>, vector<8x16xf32>, vector<8x8xf32> -> vector<8x8xf32>
    "tpu.trace_stop"() : () -> ()
    %67 = vector.broadcast %43 : vector<1x8xf32> to vector<8x8xf32>
    %68 = arith.addf %66, %67 : vector<8x8xf32>
    %cst_35 = arith.constant dense<0xFF800000> : vector<8xf32>
    %69 = vector.multi_reduction <maximumf>, %68, %cst_35 [1] : vector<8x8xf32> to vector<8xf32>
    %70 = vector.shape_cast %69 : vector<8xf32> to vector<8x1xf32>
    %71 = vector.broadcast %70 : vector<8x1xf32> to vector<8x8xf32>
    %72 = arith.subf %68, %71 : vector<8x8xf32>
    %73 = math.exp %72 : vector<8x8xf32>
    %cst_36 = arith.constant dense<0.000000e+00> : vector<8xf32>
    %74 = vector.multi_reduction <add>, %73, %cst_36 [1] : vector<8x8xf32> to vector<8xf32>
    %75 = vector.shape_cast %74 : vector<8xf32> to vector<8x1xf32>
    %76 = tpu.reciprocal %75 {approx = true} : vector<8x1xf32> -> vector<8x1xf32>
    %77 = vector.broadcast %76 : vector<8x1xf32> to vector<8x8xf32>
    %78 = arith.mulf %73, %77 : vector<8x8xf32>
    %cst_37 = arith.constant dense<0.000000e+00> : vector<8x16xf32>
    %79 = tpu.matmul %78, %65, %cst_37 {dimension_numbers = #tpu.dot_dimension_numbers<[1], [0], [0], [1], [0, 0, 1, 1], [], []>} : vector<8x8xf32>, vector<8x16xf32>, vector<8x16xf32> -> vector<8x16xf32>
    %80 = vector.extract_strided_slice %35 {offsets = [16, 0], sizes = [16, 32], strides = [1, 1]} : vector<32x32xf32> to vector<16x32xf32>
    %cst_38 = arith.constant dense<0.000000e+00> : vector<8x32xf32>
    %81 = tpu.matmul %79, %80, %cst_38 {dimension_numbers = #tpu.dot_dimension_numbers<[1], [0], [0], [1], [0, 0, 1, 1], [], []>} : vector<8x16xf32>, vector<16x32xf32>, vector<8x32xf32> -> vector<8x32xf32>
    %82 = arith.addf %62, %81 : vector<8x32xf32>
    %83 = vector.extract_strided_slice %29 {offsets = [1, 0], sizes = [1, 8], strides = [1, 1]} : vector<2x8xf32> to vector<1x8xf32>
    %84 = vector.extract_strided_slice %42 {offsets = [8, 0], sizes = [8, 16], strides = [1, 1]} : vector<16x96xf32> to vector<8x16xf32>
    %85 = vector.extract_strided_slice %42 {offsets = [8, 32], sizes = [8, 16], strides = [1, 1]} : vector<16x96xf32> to vector<8x16xf32>
    %86 = vector.extract_strided_slice %42 {offsets = [8, 64], sizes = [8, 16], strides = [1, 1]} : vector<16x96xf32> to vector<8x16xf32>
    "tpu.trace_start"() <{level = 10 : i32, message = "qd,kd->qk"}> : () -> ()
    %cst_39 = arith.constant dense<0.000000e+00> : vector<8x8xf32>
    %87 = tpu.matmul %84, %85, %cst_39 {dimension_numbers = #tpu.dot_dimension_numbers<[1], [1], [0], [0], [0, 0, 1, 0], [], []>} : vector<8x16xf32>, vector<8x16xf32>, vector<8x8xf32> -> vector<8x8xf32>
    "tpu.trace_stop"() : () -> ()
    %88 = vector.broadcast %83 : vector<1x8xf32> to vector<8x8xf32>
    %89 = arith.addf %87, %88 : vector<8x8xf32>
    %cst_40 = arith.constant dense<0xFF800000> : vector<8xf32>
    %90 = vector.multi_reduction <maximumf>, %89, %cst_40 [1] : vector<8x8xf32> to vector<8xf32>
    %91 = vector.shape_cast %90 : vector<8xf32> to vector<8x1xf32>
    %92 = vector.broadcast %91 : vector<8x1xf32> to vector<8x8xf32>
    %93 = arith.subf %89, %92 : vector<8x8xf32>
    %94 = math.exp %93 : vector<8x8xf32>
    %cst_41 = arith.constant dense<0.000000e+00> : vector<8xf32>
    %95 = vector.multi_reduction <add>, %94, %cst_41 [1] : vector<8x8xf32> to vector<8xf32>
    %96 = vector.shape_cast %95 : vector<8xf32> to vector<8x1xf32>
    %97 = tpu.reciprocal %96 {approx = true} : vector<8x1xf32> -> vector<8x1xf32>
    %98 = vector.broadcast %97 : vector<8x1xf32> to vector<8x8xf32>
    %99 = arith.mulf %94, %98 : vector<8x8xf32>
    %cst_42 = arith.constant dense<0.000000e+00> : vector<8x16xf32>
    %100 = tpu.matmul %99, %86, %cst_42 {dimension_numbers = #tpu.dot_dimension_numbers<[1], [0], [0], [1], [0, 0, 1, 1], [], []>} : vector<8x8xf32>, vector<8x16xf32>, vector<8x16xf32> -> vector<8x16xf32>
    %101 = vector.extract_strided_slice %35 {offsets = [0, 0], sizes = [16, 32], strides = [1, 1]} : vector<32x32xf32> to vector<16x32xf32>
    %cst_43 = arith.constant dense<0.000000e+00> : vector<8x32xf32>
    %102 = tpu.matmul %100, %101, %cst_43 {dimension_numbers = #tpu.dot_dimension_numbers<[1], [0], [0], [1], [0, 0, 1, 1], [], []>} : vector<8x16xf32>, vector<16x32xf32>, vector<8x32xf32> -> vector<8x32xf32>
    %103 = vector.extract_strided_slice %42 {offsets = [8, 16], sizes = [8, 16], strides = [1, 1]} : vector<16x96xf32> to vector<8x16xf32>
    %104 = vector.extract_strided_slice %42 {offsets = [8, 48], sizes = [8, 16], strides = [1, 1]} : vector<16x96xf32> to vector<8x16xf32>
    %105 = vector.extract_strided_slice %42 {offsets = [8, 80], sizes = [8, 16], strides = [1, 1]} : vector<16x96xf32> to vector<8x16xf32>
    "tpu.trace_start"() <{level = 10 : i32, message = "qd,kd->qk"}> : () -> ()
    %cst_44 = arith.constant dense<0.000000e+00> : vector<8x8xf32>
    %106 = tpu.matmul %103, %104, %cst_44 {dimension_numbers = #tpu.dot_dimension_numbers<[1], [1], [0], [0], [0, 0, 1, 0], [], []>} : vector<8x16xf32>, vector<8x16xf32>, vector<8x8xf32> -> vector<8x8xf32>
    "tpu.trace_stop"() : () -> ()
    %107 = vector.broadcast %83 : vector<1x8xf32> to vector<8x8xf32>
    %108 = arith.addf %106, %107 : vector<8x8xf32>
    %cst_45 = arith.constant dense<0xFF800000> : vector<8xf32>
    %109 = vector.multi_reduction <maximumf>, %108, %cst_45 [1] : vector<8x8xf32> to vector<8xf32>
    %110 = vector.shape_cast %109 : vector<8xf32> to vector<8x1xf32>
    %111 = vector.broadcast %110 : vector<8x1xf32> to vector<8x8xf32>
    %112 = arith.subf %108, %111 : vector<8x8xf32>
    %113 = math.exp %112 : vector<8x8xf32>
    %cst_46 = arith.constant dense<0.000000e+00> : vector<8xf32>
    %114 = vector.multi_reduction <add>, %113, %cst_46 [1] : vector<8x8xf32> to vector<8xf32>
    %115 = vector.shape_cast %114 : vector<8xf32> to vector<8x1xf32>
    %116 = tpu.reciprocal %115 {approx = true} : vector<8x1xf32> -> vector<8x1xf32>
    %117 = vector.broadcast %116 : vector<8x1xf32> to vector<8x8xf32>
    %118 = arith.mulf %113, %117 : vector<8x8xf32>
    %cst_47 = arith.constant dense<0.000000e+00> : vector<8x16xf32>
    %119 = tpu.matmul %118, %105, %cst_47 {dimension_numbers = #tpu.dot_dimension_numbers<[1], [0], [0], [1], [0, 0, 1, 1], [], []>} : vector<8x8xf32>, vector<8x16xf32>, vector<8x16xf32> -> vector<8x16xf32>
    %120 = vector.extract_strided_slice %35 {offsets = [16, 0], sizes = [16, 32], strides = [1, 1]} : vector<32x32xf32> to vector<16x32xf32>
    %cst_48 = arith.constant dense<0.000000e+00> : vector<8x32xf32>
    %121 = tpu.matmul %119, %120, %cst_48 {dimension_numbers = #tpu.dot_dimension_numbers<[1], [0], [0], [1], [0, 0, 1, 1], [], []>} : vector<8x16xf32>, vector<16x32xf32>, vector<8x32xf32> -> vector<8x32xf32>
    %122 = arith.addf %102, %121 : vector<8x32xf32>
    %123 = tpu.concatenate %82, %122 in 0 : vector<8x32xf32>, vector<8x32xf32> -> vector<16x32xf32>
    %c0_49 = arith.constant 0 : index
    %c0_50 = arith.constant 0 : index
    %c0_51 = arith.constant 0 : index
    %124 = vector.load %arg7[%c0_49, %c0_50, %c0_51] : memref<2x1x32xf32, #tpu.memory_space<vmem>>, vector<1x1x32xf32>
    %125 = vector.shape_cast %124 : vector<1x1x32xf32> to vector<1x32xf32>
    %126 = vector.broadcast %125 : vector<1x32xf32> to vector<16x32xf32>
    %127 = arith.addf %123, %126 : vector<16x32xf32>
    %128 = arith.addf %127, %24 : vector<16x32xf32>
    %c0_52 = arith.constant 0 : index
    %c0_53 = arith.constant 0 : index
    %c0_54 = arith.constant 0 : index
    %129 = vector.load %arg8[%c0_52, %c0_53, %c0_54] : memref<2x1x32xf32, #tpu.memory_space<vmem>>, vector<1x1x32xf32>
    %130 = vector.shape_cast %129 : vector<1x1x32xf32> to vector<1x32xf32>
    %c0_55 = arith.constant 0 : index
    %c0_56 = arith.constant 0 : index
    %c0_57 = arith.constant 0 : index
    %131 = vector.load %arg9[%c0_55, %c0_56, %c0_57] : memref<2x1x32xf32, #tpu.memory_space<vmem>>, vector<1x1x32xf32>
    %132 = vector.shape_cast %131 : vector<1x1x32xf32> to vector<1x32xf32>
    %cst_58 = arith.constant dense<0.000000e+00> : vector<16xf32>
    %133 = vector.multi_reduction <add>, %128, %cst_58 [1] : vector<16x32xf32> to vector<16xf32>
    %134 = vector.shape_cast %133 : vector<16xf32> to vector<16x1xf32>
    %cst_59 = arith.constant 3.200000e+01 : f32
    %135 = vector.broadcast %cst_59 : f32 to vector<16x1xf32>
    %136 = arith.divf %134, %135 : vector<16x1xf32>
    %137 = vector.broadcast %136 : vector<16x1xf32> to vector<16x32xf32>
    %138 = arith.subf %128, %137 : vector<16x32xf32>
    %139 = arith.mulf %138, %138 : vector<16x32xf32>
    %cst_60 = arith.constant dense<0.000000e+00> : vector<16xf32>
    %140 = vector.multi_reduction <add>, %139, %cst_60 [1] : vector<16x32xf32> to vector<16xf32>
    %141 = vector.shape_cast %140 : vector<16xf32> to vector<16x1xf32>
    %cst_61 = arith.constant 3.200000e+01 : f32
    %142 = vector.broadcast %cst_61 : f32 to vector<16x1xf32>
    %143 = arith.divf %141, %142 : vector<16x1xf32>
    %144 = vector.broadcast %136 : vector<16x1xf32> to vector<16x32xf32>
    %145 = arith.subf %128, %144 : vector<16x32xf32>
    %cst_62 = arith.constant 9.99999996E-13 : f32
    %146 = vector.broadcast %cst_62 : f32 to vector<16x1xf32>
    %147 = arith.addf %143, %146 : vector<16x1xf32>
    %148 = math.rsqrt %147 : vector<16x1xf32>
    %149 = vector.broadcast %148 : vector<16x1xf32> to vector<16x32xf32>
    %150 = arith.mulf %145, %149 : vector<16x32xf32>
    %151 = vector.broadcast %130 : vector<1x32xf32> to vector<16x32xf32>
    %152 = arith.mulf %150, %151 : vector<16x32xf32>
    %153 = vector.broadcast %132 : vector<1x32xf32> to vector<16x32xf32>
    %154 = arith.addf %152, %153 : vector<16x32xf32>
    %cst_63 = arith.constant dense<0.000000e+00> : vector<16x64xf32>
    %155 = tpu.matmul %154, %37, %cst_63 {dimension_numbers = #tpu.dot_dimension_numbers<[1], [0], [0], [1], [0, 0, 1, 1], [], []>} : vector<16x32xf32>, vector<32x64xf32>, vector<16x64xf32> -> vector<16x64xf32>
    %c0_64 = arith.constant 0 : index
    %c0_65 = arith.constant 0 : index
    %c0_66 = arith.constant 0 : index
    %156 = vector.load %arg11[%c0_64, %c0_65, %c0_66] : memref<2x1x64xf32, #tpu.memory_space<vmem>>, vector<1x1x64xf32>
    %157 = vector.shape_cast %156 : vector<1x1x64xf32> to vector<1x64xf32>
    %158 = vector.broadcast %157 : vector<1x64xf32> to vector<16x64xf32>
    %159 = arith.addf %155, %158 : vector<16x64xf32>
    %cst_67 = arith.constant 5.000000e-01 : f32
    %160 = vector.broadcast %cst_67 : f32 to vector<16x64xf32>
    %161 = arith.mulf %160, %159 : vector<16x64xf32>
    %cst_68 = arith.constant 0.707106769 : f32
    %162 = vector.broadcast %cst_68 : f32 to vector<16x64xf32>
    %163 = arith.mulf %159, %162 : vector<16x64xf32>
    %164 = math.absf %163 : vector<16x64xf32>
    %cst_69 = arith.constant 0.327591091 : f32
    %165 = vector.broadcast %cst_69 : f32 to vector<16x64xf32>
    %166 = arith.mulf %165, %164 : vector<16x64xf32>
    %cst_70 = arith.constant 1.000000e+00 : f32
    %167 = vector.broadcast %cst_70 : f32 to vector<16x64xf32>
    %168 = arith.addf %167, %166 : vector<16x64xf32>
    %cst_71 = arith.constant 1.000000e+00 : f32
    %169 = vector.broadcast %cst_71 : f32 to vector<16x64xf32>
    %170 = arith.divf %169, %168 : vector<16x64xf32>
    %cst_72 = arith.constant 1.06140542 : f32
    %171 = vector.broadcast %cst_72 : f32 to vector<16x64xf32>
    %172 = arith.mulf %171, %170 : vector<16x64xf32>
    %cst_73 = arith.constant -1.45315206 : f32
    %173 = vector.broadcast %cst_73 : f32 to vector<16x64xf32>
    %174 = arith.addf %172, %173 : vector<16x64xf32>
    %175 = arith.mulf %174, %170 : vector<16x64xf32>
    %cst_74 = arith.constant 1.42141378 : f32
    %176 = vector.broadcast %cst_74 : f32 to vector<16x64xf32>
    %177 = arith.addf %175, %176 : vector<16x64xf32>
    %178 = arith.mulf %177, %170 : vector<16x64xf32>
    %cst_75 = arith.constant -0.284496725 : f32
    %179 = vector.broadcast %cst_75 : f32 to vector<16x64xf32>
    %180 = arith.addf %178, %179 : vector<16x64xf32>
    %181 = arith.mulf %180, %170 : vector<16x64xf32>
    %cst_76 = arith.constant 0.254829586 : f32
    %182 = vector.broadcast %cst_76 : f32 to vector<16x64xf32>
    %183 = arith.addf %181, %182 : vector<16x64xf32>
    %184 = arith.mulf %183, %170 : vector<16x64xf32>
    %cst_77 = arith.constant 0.000000e+00 : f32
    %185 = vector.broadcast %cst_77 : f32 to vector<16x64xf32>
    %186 = arith.subf %185, %164 : vector<16x64xf32>
    %187 = arith.mulf %186, %164 : vector<16x64xf32>
    %188 = math.exp %187 : vector<16x64xf32>
    %189 = arith.mulf %184, %188 : vector<16x64xf32>
    %cst_78 = arith.constant 1.000000e+00 : f32
    %190 = vector.broadcast %cst_78 : f32 to vector<16x64xf32>
    %191 = arith.subf %190, %189 : vector<16x64xf32>
    %cst_79 = arith.constant 0.000000e+00 : f32
    %192 = vector.broadcast %cst_79 : f32 to vector<16x64xf32>
    %193 = arith.cmpf oge, %163, %192 : vector<16x64xf32>
    %cst_80 = arith.constant 0.000000e+00 : f32
    %194 = vector.broadcast %cst_80 : f32 to vector<16x64xf32>
    %195 = arith.subf %194, %191 : vector<16x64xf32>
    %196 = arith.select %193, %191, %195 : vector<16x64xi1>, vector<16x64xf32>
    %cst_81 = arith.constant 1.000000e+00 : f32
    %197 = vector.broadcast %cst_81 : f32 to vector<16x64xf32>
    %198 = arith.addf %197, %196 : vector<16x64xf32>
    %199 = arith.mulf %161, %198 : vector<16x64xf32>
    %cst_82 = arith.constant dense<0.000000e+00> : vector<16x32xf32>
    %200 = tpu.matmul %199, %39, %cst_82 {dimension_numbers = #tpu.dot_dimension_numbers<[1], [0], [0], [1], [0, 0, 1, 1], [], []>} : vector<16x64xf32>, vector<64x32xf32>, vector<16x32xf32> -> vector<16x32xf32>
    %c0_83 = arith.constant 0 : index
    %c0_84 = arith.constant 0 : index
    %c0_85 = arith.constant 0 : index
    %201 = vector.load %arg13[%c0_83, %c0_84, %c0_85] : memref<2x1x32xf32, #tpu.memory_space<vmem>>, vector<1x1x32xf32>
    %202 = vector.shape_cast %201 : vector<1x1x32xf32> to vector<1x32xf32>
    %203 = vector.broadcast %202 : vector<1x32xf32> to vector<16x32xf32>
    %204 = arith.addf %200, %203 : vector<16x32xf32>
    %205 = arith.addf %204, %154 : vector<16x32xf32>
    %c0_86 = arith.constant 0 : index
    %c0_87 = arith.constant 0 : index
    %c0_88 = arith.constant 0 : index
    %206 = vector.load %arg14[%c0_86, %c0_87, %c0_88] : memref<2x1x32xf32, #tpu.memory_space<vmem>>, vector<1x1x32xf32>
    %207 = vector.shape_cast %206 : vector<1x1x32xf32> to vector<1x32xf32>
    %c0_89 = arith.constant 0 : index
    %c0_90 = arith.constant 0 : index
    %c0_91 = arith.constant 0 : index
    %208 = vector.load %arg15[%c0_89, %c0_90, %c0_91] : memref<2x1x32xf32, #tpu.memory_space<vmem>>, vector<1x1x32xf32>
    %209 = vector.shape_cast %208 : vector<1x1x32xf32> to vector<1x32xf32>
    %cst_92 = arith.constant dense<0.000000e+00> : vector<16xf32>
    %210 = vector.multi_reduction <add>, %205, %cst_92 [1] : vector<16x32xf32> to vector<16xf32>
    %211 = vector.shape_cast %210 : vector<16xf32> to vector<16x1xf32>
    %cst_93 = arith.constant 3.200000e+01 : f32
    %212 = vector.broadcast %cst_93 : f32 to vector<16x1xf32>
    %213 = arith.divf %211, %212 : vector<16x1xf32>
    %214 = vector.broadcast %213 : vector<16x1xf32> to vector<16x32xf32>
    %215 = arith.subf %205, %214 : vector<16x32xf32>
    %216 = arith.mulf %215, %215 : vector<16x32xf32>
    %cst_94 = arith.constant dense<0.000000e+00> : vector<16xf32>
    %217 = vector.multi_reduction <add>, %216, %cst_94 [1] : vector<16x32xf32> to vector<16xf32>
    %218 = vector.shape_cast %217 : vector<16xf32> to vector<16x1xf32>
    %cst_95 = arith.constant 3.200000e+01 : f32
    %219 = vector.broadcast %cst_95 : f32 to vector<16x1xf32>
    %220 = arith.divf %218, %219 : vector<16x1xf32>
    %221 = vector.broadcast %213 : vector<16x1xf32> to vector<16x32xf32>
    %222 = arith.subf %205, %221 : vector<16x32xf32>
    %cst_96 = arith.constant 9.99999996E-13 : f32
    %223 = vector.broadcast %cst_96 : f32 to vector<16x1xf32>
    %224 = arith.addf %220, %223 : vector<16x1xf32>
    %225 = math.rsqrt %224 : vector<16x1xf32>
    %226 = vector.broadcast %225 : vector<16x1xf32> to vector<16x32xf32>
    %227 = arith.mulf %222, %226 : vector<16x32xf32>
    %228 = vector.broadcast %207 : vector<1x32xf32> to vector<16x32xf32>
    %229 = arith.mulf %227, %228 : vector<16x32xf32>
    %230 = vector.broadcast %209 : vector<1x32xf32> to vector<16x32xf32>
    %231 = arith.addf %229, %230 : vector<16x32xf32>
    %c1 = arith.constant 1 : index
    %c0_97 = arith.constant 0 : index
    %c0_98 = arith.constant 0 : index
    %232 = vector.load %arg4[%c1, %c0_97, %c0_98] : memref<2x32x96xf32, #tpu.memory_space<vmem>>, vector<1x32x96xf32>
    %233 = vector.shape_cast %232 : vector<1x32x96xf32> to vector<32x96xf32>
    %c1_99 = arith.constant 1 : index
    %c0_100 = arith.constant 0 : index
    %c0_101 = arith.constant 0 : index
    %234 = vector.load %arg5[%c1_99, %c0_100, %c0_101] : memref<2x1x96xf32, #tpu.memory_space<vmem>>, vector<1x1x96xf32>
    %235 = vector.shape_cast %234 : vector<1x1x96xf32> to vector<1x96xf32>
    %c1_102 = arith.constant 1 : index
    %c0_103 = arith.constant 0 : index
    %c0_104 = arith.constant 0 : index
    %236 = vector.load %arg6[%c1_102, %c0_103, %c0_104] : memref<2x32x32xf32, #tpu.memory_space<vmem>>, vector<1x32x32xf32>
    %237 = vector.shape_cast %236 : vector<1x32x32xf32> to vector<32x32xf32>
    %c1_105 = arith.constant 1 : index
    %c0_106 = arith.constant 0 : index
    %c0_107 = arith.constant 0 : index
    %238 = vector.load %arg10[%c1_105, %c0_106, %c0_107] : memref<2x32x64xf32, #tpu.memory_space<vmem>>, vector<1x32x64xf32>
    %239 = vector.shape_cast %238 : vector<1x32x64xf32> to vector<32x64xf32>
    %c1_108 = arith.constant 1 : index
    %c0_109 = arith.constant 0 : index
    %c0_110 = arith.constant 0 : index
    %240 = vector.load %arg12[%c1_108, %c0_109, %c0_110] : memref<2x64x32xf32, #tpu.memory_space<vmem>>, vector<1x64x32xf32>
    %241 = vector.shape_cast %240 : vector<1x64x32xf32> to vector<64x32xf32>
    %cst_111 = arith.constant dense<0.000000e+00> : vector<16x96xf32>
    %242 = tpu.matmul %231, %233, %cst_111 {dimension_numbers = #tpu.dot_dimension_numbers<[1], [0], [0], [1], [0, 0, 1, 1], [], []>} : vector<16x32xf32>, vector<32x96xf32>, vector<16x96xf32> -> vector<16x96xf32>
    %243 = vector.broadcast %235 : vector<1x96xf32> to vector<16x96xf32>
    %244 = arith.addf %242, %243 : vector<16x96xf32>
    %245 = vector.extract_strided_slice %29 {offsets = [0, 0], sizes = [1, 8], strides = [1, 1]} : vector<2x8xf32> to vector<1x8xf32>
    %246 = vector.extract_strided_slice %244 {offsets = [0, 0], sizes = [8, 16], strides = [1, 1]} : vector<16x96xf32> to vector<8x16xf32>
    %247 = vector.extract_strided_slice %244 {offsets = [0, 32], sizes = [8, 16], strides = [1, 1]} : vector<16x96xf32> to vector<8x16xf32>
    %248 = vector.extract_strided_slice %244 {offsets = [0, 64], sizes = [8, 16], strides = [1, 1]} : vector<16x96xf32> to vector<8x16xf32>
    "tpu.trace_start"() <{level = 10 : i32, message = "qd,kd->qk"}> : () -> ()
    %cst_112 = arith.constant dense<0.000000e+00> : vector<8x8xf32>
    %249 = tpu.matmul %246, %247, %cst_112 {dimension_numbers = #tpu.dot_dimension_numbers<[1], [1], [0], [0], [0, 0, 1, 0], [], []>} : vector<8x16xf32>, vector<8x16xf32>, vector<8x8xf32> -> vector<8x8xf32>
    "tpu.trace_stop"() : () -> ()
    %250 = vector.broadcast %245 : vector<1x8xf32> to vector<8x8xf32>
    %251 = arith.addf %249, %250 : vector<8x8xf32>
    %cst_113 = arith.constant dense<0xFF800000> : vector<8xf32>
    %252 = vector.multi_reduction <maximumf>, %251, %cst_113 [1] : vector<8x8xf32> to vector<8xf32>
    %253 = vector.shape_cast %252 : vector<8xf32> to vector<8x1xf32>
    %254 = vector.broadcast %253 : vector<8x1xf32> to vector<8x8xf32>
    %255 = arith.subf %251, %254 : vector<8x8xf32>
    %256 = math.exp %255 : vector<8x8xf32>
    %cst_114 = arith.constant dense<0.000000e+00> : vector<8xf32>
    %257 = vector.multi_reduction <add>, %256, %cst_114 [1] : vector<8x8xf32> to vector<8xf32>
    %258 = vector.shape_cast %257 : vector<8xf32> to vector<8x1xf32>
    %259 = tpu.reciprocal %258 {approx = true} : vector<8x1xf32> -> vector<8x1xf32>
    %260 = vector.broadcast %259 : vector<8x1xf32> to vector<8x8xf32>
    %261 = arith.mulf %256, %260 : vector<8x8xf32>
    %cst_115 = arith.constant dense<0.000000e+00> : vector<8x16xf32>
    %262 = tpu.matmul %261, %248, %cst_115 {dimension_numbers = #tpu.dot_dimension_numbers<[1], [0], [0], [1], [0, 0, 1, 1], [], []>} : vector<8x8xf32>, vector<8x16xf32>, vector<8x16xf32> -> vector<8x16xf32>
    %263 = vector.extract_strided_slice %237 {offsets = [0, 0], sizes = [16, 32], strides = [1, 1]} : vector<32x32xf32> to vector<16x32xf32>
    %cst_116 = arith.constant dense<0.000000e+00> : vector<8x32xf32>
    %264 = tpu.matmul %262, %263, %cst_116 {dimension_numbers = #tpu.dot_dimension_numbers<[1], [0], [0], [1], [0, 0, 1, 1], [], []>} : vector<8x16xf32>, vector<16x32xf32>, vector<8x32xf32> -> vector<8x32xf32>
    %265 = vector.extract_strided_slice %244 {offsets = [0, 16], sizes = [8, 16], strides = [1, 1]} : vector<16x96xf32> to vector<8x16xf32>
    %266 = vector.extract_strided_slice %244 {offsets = [0, 48], sizes = [8, 16], strides = [1, 1]} : vector<16x96xf32> to vector<8x16xf32>
    %267 = vector.extract_strided_slice %244 {offsets = [0, 80], sizes = [8, 16], strides = [1, 1]} : vector<16x96xf32> to vector<8x16xf32>
    "tpu.trace_start"() <{level = 10 : i32, message = "qd,kd->qk"}> : () -> ()
    %cst_117 = arith.constant dense<0.000000e+00> : vector<8x8xf32>
    %268 = tpu.matmul %265, %266, %cst_117 {dimension_numbers = #tpu.dot_dimension_numbers<[1], [1], [0], [0], [0, 0, 1, 0], [], []>} : vector<8x16xf32>, vector<8x16xf32>, vector<8x8xf32> -> vector<8x8xf32>
    "tpu.trace_stop"() : () -> ()
    %269 = vector.broadcast %245 : vector<1x8xf32> to vector<8x8xf32>
    %270 = arith.addf %268, %269 : vector<8x8xf32>
    %cst_118 = arith.constant dense<0xFF800000> : vector<8xf32>
    %271 = vector.multi_reduction <maximumf>, %270, %cst_118 [1] : vector<8x8xf32> to vector<8xf32>
    %272 = vector.shape_cast %271 : vector<8xf32> to vector<8x1xf32>
    %273 = vector.broadcast %272 : vector<8x1xf32> to vector<8x8xf32>
    %274 = arith.subf %270, %273 : vector<8x8xf32>
    %275 = math.exp %274 : vector<8x8xf32>
    %cst_119 = arith.constant dense<0.000000e+00> : vector<8xf32>
    %276 = vector.multi_reduction <add>, %275, %cst_119 [1] : vector<8x8xf32> to vector<8xf32>
    %277 = vector.shape_cast %276 : vector<8xf32> to vector<8x1xf32>
    %278 = tpu.reciprocal %277 {approx = true} : vector<8x1xf32> -> vector<8x1xf32>
    %279 = vector.broadcast %278 : vector<8x1xf32> to vector<8x8xf32>
    %280 = arith.mulf %275, %279 : vector<8x8xf32>
    %cst_120 = arith.constant dense<0.000000e+00> : vector<8x16xf32>
    %281 = tpu.matmul %280, %267, %cst_120 {dimension_numbers = #tpu.dot_dimension_numbers<[1], [0], [0], [1], [0, 0, 1, 1], [], []>} : vector<8x8xf32>, vector<8x16xf32>, vector<8x16xf32> -> vector<8x16xf32>
    %282 = vector.extract_strided_slice %237 {offsets = [16, 0], sizes = [16, 32], strides = [1, 1]} : vector<32x32xf32> to vector<16x32xf32>
    %cst_121 = arith.constant dense<0.000000e+00> : vector<8x32xf32>
    %283 = tpu.matmul %281, %282, %cst_121 {dimension_numbers = #tpu.dot_dimension_numbers<[1], [0], [0], [1], [0, 0, 1, 1], [], []>} : vector<8x16xf32>, vector<16x32xf32>, vector<8x32xf32> -> vector<8x32xf32>
    %284 = arith.addf %264, %283 : vector<8x32xf32>
    %285 = vector.extract_strided_slice %29 {offsets = [1, 0], sizes = [1, 8], strides = [1, 1]} : vector<2x8xf32> to vector<1x8xf32>
    %286 = vector.extract_strided_slice %244 {offsets = [8, 0], sizes = [8, 16], strides = [1, 1]} : vector<16x96xf32> to vector<8x16xf32>
    %287 = vector.extract_strided_slice %244 {offsets = [8, 32], sizes = [8, 16], strides = [1, 1]} : vector<16x96xf32> to vector<8x16xf32>
    %288 = vector.extract_strided_slice %244 {offsets = [8, 64], sizes = [8, 16], strides = [1, 1]} : vector<16x96xf32> to vector<8x16xf32>
    "tpu.trace_start"() <{level = 10 : i32, message = "qd,kd->qk"}> : () -> ()
    %cst_122 = arith.constant dense<0.000000e+00> : vector<8x8xf32>
    %289 = tpu.matmul %286, %287, %cst_122 {dimension_numbers = #tpu.dot_dimension_numbers<[1], [1], [0], [0], [0, 0, 1, 0], [], []>} : vector<8x16xf32>, vector<8x16xf32>, vector<8x8xf32> -> vector<8x8xf32>
    "tpu.trace_stop"() : () -> ()
    %290 = vector.broadcast %285 : vector<1x8xf32> to vector<8x8xf32>
    %291 = arith.addf %289, %290 : vector<8x8xf32>
    %cst_123 = arith.constant dense<0xFF800000> : vector<8xf32>
    %292 = vector.multi_reduction <maximumf>, %291, %cst_123 [1] : vector<8x8xf32> to vector<8xf32>
    %293 = vector.shape_cast %292 : vector<8xf32> to vector<8x1xf32>
    %294 = vector.broadcast %293 : vector<8x1xf32> to vector<8x8xf32>
    %295 = arith.subf %291, %294 : vector<8x8xf32>
    %296 = math.exp %295 : vector<8x8xf32>
    %cst_124 = arith.constant dense<0.000000e+00> : vector<8xf32>
    %297 = vector.multi_reduction <add>, %296, %cst_124 [1] : vector<8x8xf32> to vector<8xf32>
    %298 = vector.shape_cast %297 : vector<8xf32> to vector<8x1xf32>
    %299 = tpu.reciprocal %298 {approx = true} : vector<8x1xf32> -> vector<8x1xf32>
    %300 = vector.broadcast %299 : vector<8x1xf32> to vector<8x8xf32>
    %301 = arith.mulf %296, %300 : vector<8x8xf32>
    %cst_125 = arith.constant dense<0.000000e+00> : vector<8x16xf32>
    %302 = tpu.matmul %301, %288, %cst_125 {dimension_numbers = #tpu.dot_dimension_numbers<[1], [0], [0], [1], [0, 0, 1, 1], [], []>} : vector<8x8xf32>, vector<8x16xf32>, vector<8x16xf32> -> vector<8x16xf32>
    %303 = vector.extract_strided_slice %237 {offsets = [0, 0], sizes = [16, 32], strides = [1, 1]} : vector<32x32xf32> to vector<16x32xf32>
    %cst_126 = arith.constant dense<0.000000e+00> : vector<8x32xf32>
    %304 = tpu.matmul %302, %303, %cst_126 {dimension_numbers = #tpu.dot_dimension_numbers<[1], [0], [0], [1], [0, 0, 1, 1], [], []>} : vector<8x16xf32>, vector<16x32xf32>, vector<8x32xf32> -> vector<8x32xf32>
    %305 = vector.extract_strided_slice %244 {offsets = [8, 16], sizes = [8, 16], strides = [1, 1]} : vector<16x96xf32> to vector<8x16xf32>
    %306 = vector.extract_strided_slice %244 {offsets = [8, 48], sizes = [8, 16], strides = [1, 1]} : vector<16x96xf32> to vector<8x16xf32>
    %307 = vector.extract_strided_slice %244 {offsets = [8, 80], sizes = [8, 16], strides = [1, 1]} : vector<16x96xf32> to vector<8x16xf32>
    "tpu.trace_start"() <{level = 10 : i32, message = "qd,kd->qk"}> : () -> ()
    %cst_127 = arith.constant dense<0.000000e+00> : vector<8x8xf32>
    %308 = tpu.matmul %305, %306, %cst_127 {dimension_numbers = #tpu.dot_dimension_numbers<[1], [1], [0], [0], [0, 0, 1, 0], [], []>} : vector<8x16xf32>, vector<8x16xf32>, vector<8x8xf32> -> vector<8x8xf32>
    "tpu.trace_stop"() : () -> ()
    %309 = vector.broadcast %285 : vector<1x8xf32> to vector<8x8xf32>
    %310 = arith.addf %308, %309 : vector<8x8xf32>
    %cst_128 = arith.constant dense<0xFF800000> : vector<8xf32>
    %311 = vector.multi_reduction <maximumf>, %310, %cst_128 [1] : vector<8x8xf32> to vector<8xf32>
    %312 = vector.shape_cast %311 : vector<8xf32> to vector<8x1xf32>
    %313 = vector.broadcast %312 : vector<8x1xf32> to vector<8x8xf32>
    %314 = arith.subf %310, %313 : vector<8x8xf32>
    %315 = math.exp %314 : vector<8x8xf32>
    %cst_129 = arith.constant dense<0.000000e+00> : vector<8xf32>
    %316 = vector.multi_reduction <add>, %315, %cst_129 [1] : vector<8x8xf32> to vector<8xf32>
    %317 = vector.shape_cast %316 : vector<8xf32> to vector<8x1xf32>
    %318 = tpu.reciprocal %317 {approx = true} : vector<8x1xf32> -> vector<8x1xf32>
    %319 = vector.broadcast %318 : vector<8x1xf32> to vector<8x8xf32>
    %320 = arith.mulf %315, %319 : vector<8x8xf32>
    %cst_130 = arith.constant dense<0.000000e+00> : vector<8x16xf32>
    %321 = tpu.matmul %320, %307, %cst_130 {dimension_numbers = #tpu.dot_dimension_numbers<[1], [0], [0], [1], [0, 0, 1, 1], [], []>} : vector<8x8xf32>, vector<8x16xf32>, vector<8x16xf32> -> vector<8x16xf32>
    %322 = vector.extract_strided_slice %237 {offsets = [16, 0], sizes = [16, 32], strides = [1, 1]} : vector<32x32xf32> to vector<16x32xf32>
    %cst_131 = arith.constant dense<0.000000e+00> : vector<8x32xf32>
    %323 = tpu.matmul %321, %322, %cst_131 {dimension_numbers = #tpu.dot_dimension_numbers<[1], [0], [0], [1], [0, 0, 1, 1], [], []>} : vector<8x16xf32>, vector<16x32xf32>, vector<8x32xf32> -> vector<8x32xf32>
    %324 = arith.addf %304, %323 : vector<8x32xf32>
    %325 = tpu.concatenate %284, %324 in 0 : vector<8x32xf32>, vector<8x32xf32> -> vector<16x32xf32>
    %c1_132 = arith.constant 1 : index
    %c0_133 = arith.constant 0 : index
    %c0_134 = arith.constant 0 : index
    %326 = vector.load %arg7[%c1_132, %c0_133, %c0_134] : memref<2x1x32xf32, #tpu.memory_space<vmem>>, vector<1x1x32xf32>
    %327 = vector.shape_cast %326 : vector<1x1x32xf32> to vector<1x32xf32>
    %328 = vector.broadcast %327 : vector<1x32xf32> to vector<16x32xf32>
    %329 = arith.addf %325, %328 : vector<16x32xf32>
    %330 = arith.addf %329, %231 : vector<16x32xf32>
    %c1_135 = arith.constant 1 : index
    %c0_136 = arith.constant 0 : index
    %c0_137 = arith.constant 0 : index
    %331 = vector.load %arg8[%c1_135, %c0_136, %c0_137] : memref<2x1x32xf32, #tpu.memory_space<vmem>>, vector<1x1x32xf32>
    %332 = vector.shape_cast %331 : vector<1x1x32xf32> to vector<1x32xf32>
    %c1_138 = arith.constant 1 : index
    %c0_139 = arith.constant 0 : index
    %c0_140 = arith.constant 0 : index
    %333 = vector.load %arg9[%c1_138, %c0_139, %c0_140] : memref<2x1x32xf32, #tpu.memory_space<vmem>>, vector<1x1x32xf32>
    %334 = vector.shape_cast %333 : vector<1x1x32xf32> to vector<1x32xf32>
    %cst_141 = arith.constant dense<0.000000e+00> : vector<16xf32>
    %335 = vector.multi_reduction <add>, %330, %cst_141 [1] : vector<16x32xf32> to vector<16xf32>
    %336 = vector.shape_cast %335 : vector<16xf32> to vector<16x1xf32>
    %cst_142 = arith.constant 3.200000e+01 : f32
    %337 = vector.broadcast %cst_142 : f32 to vector<16x1xf32>
    %338 = arith.divf %336, %337 : vector<16x1xf32>
    %339 = vector.broadcast %338 : vector<16x1xf32> to vector<16x32xf32>
    %340 = arith.subf %330, %339 : vector<16x32xf32>
    %341 = arith.mulf %340, %340 : vector<16x32xf32>
    %cst_143 = arith.constant dense<0.000000e+00> : vector<16xf32>
    %342 = vector.multi_reduction <add>, %341, %cst_143 [1] : vector<16x32xf32> to vector<16xf32>
    %343 = vector.shape_cast %342 : vector<16xf32> to vector<16x1xf32>
    %cst_144 = arith.constant 3.200000e+01 : f32
    %344 = vector.broadcast %cst_144 : f32 to vector<16x1xf32>
    %345 = arith.divf %343, %344 : vector<16x1xf32>
    %346 = vector.broadcast %338 : vector<16x1xf32> to vector<16x32xf32>
    %347 = arith.subf %330, %346 : vector<16x32xf32>
    %cst_145 = arith.constant 9.99999996E-13 : f32
    %348 = vector.broadcast %cst_145 : f32 to vector<16x1xf32>
    %349 = arith.addf %345, %348 : vector<16x1xf32>
    %350 = math.rsqrt %349 : vector<16x1xf32>
    %351 = vector.broadcast %350 : vector<16x1xf32> to vector<16x32xf32>
    %352 = arith.mulf %347, %351 : vector<16x32xf32>
    %353 = vector.broadcast %332 : vector<1x32xf32> to vector<16x32xf32>
    %354 = arith.mulf %352, %353 : vector<16x32xf32>
    %355 = vector.broadcast %334 : vector<1x32xf32> to vector<16x32xf32>
    %356 = arith.addf %354, %355 : vector<16x32xf32>
    %cst_146 = arith.constant dense<0.000000e+00> : vector<16x64xf32>
    %357 = tpu.matmul %356, %239, %cst_146 {dimension_numbers = #tpu.dot_dimension_numbers<[1], [0], [0], [1], [0, 0, 1, 1], [], []>} : vector<16x32xf32>, vector<32x64xf32>, vector<16x64xf32> -> vector<16x64xf32>
    %c1_147 = arith.constant 1 : index
    %c0_148 = arith.constant 0 : index
    %c0_149 = arith.constant 0 : index
    %358 = vector.load %arg11[%c1_147, %c0_148, %c0_149] : memref<2x1x64xf32, #tpu.memory_space<vmem>>, vector<1x1x64xf32>
    %359 = vector.shape_cast %358 : vector<1x1x64xf32> to vector<1x64xf32>
    %360 = vector.broadcast %359 : vector<1x64xf32> to vector<16x64xf32>
    %361 = arith.addf %357, %360 : vector<16x64xf32>
    %cst_150 = arith.constant 5.000000e-01 : f32
    %362 = vector.broadcast %cst_150 : f32 to vector<16x64xf32>
    %363 = arith.mulf %362, %361 : vector<16x64xf32>
    %cst_151 = arith.constant 0.707106769 : f32
    %364 = vector.broadcast %cst_151 : f32 to vector<16x64xf32>
    %365 = arith.mulf %361, %364 : vector<16x64xf32>
    %366 = math.absf %365 : vector<16x64xf32>
    %cst_152 = arith.constant 0.327591091 : f32
    %367 = vector.broadcast %cst_152 : f32 to vector<16x64xf32>
    %368 = arith.mulf %367, %366 : vector<16x64xf32>
    %cst_153 = arith.constant 1.000000e+00 : f32
    %369 = vector.broadcast %cst_153 : f32 to vector<16x64xf32>
    %370 = arith.addf %369, %368 : vector<16x64xf32>
    %cst_154 = arith.constant 1.000000e+00 : f32
    %371 = vector.broadcast %cst_154 : f32 to vector<16x64xf32>
    %372 = arith.divf %371, %370 : vector<16x64xf32>
    %cst_155 = arith.constant 1.06140542 : f32
    %373 = vector.broadcast %cst_155 : f32 to vector<16x64xf32>
    %374 = arith.mulf %373, %372 : vector<16x64xf32>
    %cst_156 = arith.constant -1.45315206 : f32
    %375 = vector.broadcast %cst_156 : f32 to vector<16x64xf32>
    %376 = arith.addf %374, %375 : vector<16x64xf32>
    %377 = arith.mulf %376, %372 : vector<16x64xf32>
    %cst_157 = arith.constant 1.42141378 : f32
    %378 = vector.broadcast %cst_157 : f32 to vector<16x64xf32>
    %379 = arith.addf %377, %378 : vector<16x64xf32>
    %380 = arith.mulf %379, %372 : vector<16x64xf32>
    %cst_158 = arith.constant -0.284496725 : f32
    %381 = vector.broadcast %cst_158 : f32 to vector<16x64xf32>
    %382 = arith.addf %380, %381 : vector<16x64xf32>
    %383 = arith.mulf %382, %372 : vector<16x64xf32>
    %cst_159 = arith.constant 0.254829586 : f32
    %384 = vector.broadcast %cst_159 : f32 to vector<16x64xf32>
    %385 = arith.addf %383, %384 : vector<16x64xf32>
    %386 = arith.mulf %385, %372 : vector<16x64xf32>
    %cst_160 = arith.constant 0.000000e+00 : f32
    %387 = vector.broadcast %cst_160 : f32 to vector<16x64xf32>
    %388 = arith.subf %387, %366 : vector<16x64xf32>
    %389 = arith.mulf %388, %366 : vector<16x64xf32>
    %390 = math.exp %389 : vector<16x64xf32>
    %391 = arith.mulf %386, %390 : vector<16x64xf32>
    %cst_161 = arith.constant 1.000000e+00 : f32
    %392 = vector.broadcast %cst_161 : f32 to vector<16x64xf32>
    %393 = arith.subf %392, %391 : vector<16x64xf32>
    %cst_162 = arith.constant 0.000000e+00 : f32
    %394 = vector.broadcast %cst_162 : f32 to vector<16x64xf32>
    %395 = arith.cmpf oge, %365, %394 : vector<16x64xf32>
    %cst_163 = arith.constant 0.000000e+00 : f32
    %396 = vector.broadcast %cst_163 : f32 to vector<16x64xf32>
    %397 = arith.subf %396, %393 : vector<16x64xf32>
    %398 = arith.select %395, %393, %397 : vector<16x64xi1>, vector<16x64xf32>
    %cst_164 = arith.constant 1.000000e+00 : f32
    %399 = vector.broadcast %cst_164 : f32 to vector<16x64xf32>
    %400 = arith.addf %399, %398 : vector<16x64xf32>
    %401 = arith.mulf %363, %400 : vector<16x64xf32>
    %cst_165 = arith.constant dense<0.000000e+00> : vector<16x32xf32>
    %402 = tpu.matmul %401, %241, %cst_165 {dimension_numbers = #tpu.dot_dimension_numbers<[1], [0], [0], [1], [0, 0, 1, 1], [], []>} : vector<16x64xf32>, vector<64x32xf32>, vector<16x32xf32> -> vector<16x32xf32>
    %c1_166 = arith.constant 1 : index
    %c0_167 = arith.constant 0 : index
    %c0_168 = arith.constant 0 : index
    %403 = vector.load %arg13[%c1_166, %c0_167, %c0_168] : memref<2x1x32xf32, #tpu.memory_space<vmem>>, vector<1x1x32xf32>
    %404 = vector.shape_cast %403 : vector<1x1x32xf32> to vector<1x32xf32>
    %405 = vector.broadcast %404 : vector<1x32xf32> to vector<16x32xf32>
    %406 = arith.addf %402, %405 : vector<16x32xf32>
    %407 = arith.addf %406, %356 : vector<16x32xf32>
    %c1_169 = arith.constant 1 : index
    %c0_170 = arith.constant 0 : index
    %c0_171 = arith.constant 0 : index
    %408 = vector.load %arg14[%c1_169, %c0_170, %c0_171] : memref<2x1x32xf32, #tpu.memory_space<vmem>>, vector<1x1x32xf32>
    %409 = vector.shape_cast %408 : vector<1x1x32xf32> to vector<1x32xf32>
    %c1_172 = arith.constant 1 : index
    %c0_173 = arith.constant 0 : index
    %c0_174 = arith.constant 0 : index
    %410 = vector.load %arg15[%c1_172, %c0_173, %c0_174] : memref<2x1x32xf32, #tpu.memory_space<vmem>>, vector<1x1x32xf32>
    %411 = vector.shape_cast %410 : vector<1x1x32xf32> to vector<1x32xf32>
    %cst_175 = arith.constant dense<0.000000e+00> : vector<16xf32>
    %412 = vector.multi_reduction <add>, %407, %cst_175 [1] : vector<16x32xf32> to vector<16xf32>
    %413 = vector.shape_cast %412 : vector<16xf32> to vector<16x1xf32>
    %cst_176 = arith.constant 3.200000e+01 : f32
    %414 = vector.broadcast %cst_176 : f32 to vector<16x1xf32>
    %415 = arith.divf %413, %414 : vector<16x1xf32>
    %416 = vector.broadcast %415 : vector<16x1xf32> to vector<16x32xf32>
    %417 = arith.subf %407, %416 : vector<16x32xf32>
    %418 = arith.mulf %417, %417 : vector<16x32xf32>
    %cst_177 = arith.constant dense<0.000000e+00> : vector<16xf32>
    %419 = vector.multi_reduction <add>, %418, %cst_177 [1] : vector<16x32xf32> to vector<16xf32>
    %420 = vector.shape_cast %419 : vector<16xf32> to vector<16x1xf32>
    %cst_178 = arith.constant 3.200000e+01 : f32
    %421 = vector.broadcast %cst_178 : f32 to vector<16x1xf32>
    %422 = arith.divf %420, %421 : vector<16x1xf32>
    %423 = vector.broadcast %415 : vector<16x1xf32> to vector<16x32xf32>
    %424 = arith.subf %407, %423 : vector<16x32xf32>
    %cst_179 = arith.constant 9.99999996E-13 : f32
    %425 = vector.broadcast %cst_179 : f32 to vector<16x1xf32>
    %426 = arith.addf %422, %425 : vector<16x1xf32>
    %427 = math.rsqrt %426 : vector<16x1xf32>
    %428 = vector.broadcast %427 : vector<16x1xf32> to vector<16x32xf32>
    %429 = arith.mulf %424, %428 : vector<16x32xf32>
    %430 = vector.broadcast %409 : vector<1x32xf32> to vector<16x32xf32>
    %431 = arith.mulf %429, %430 : vector<16x32xf32>
    %432 = vector.broadcast %411 : vector<1x32xf32> to vector<16x32xf32>
    %433 = arith.addf %431, %432 : vector<16x32xf32>
    %c0_180 = arith.constant 0 : index
    %c0_181 = arith.constant 0 : index
    %434 = vector.load %arg16[%c0_180, %c0_181] : memref<32x32xf32, #tpu.memory_space<vmem>>, vector<32x32xf32>
    %c0_182 = arith.constant 0 : index
    %c0_183 = arith.constant 0 : index
    %435 = vector.load %arg17[%c0_182, %c0_183] : memref<1x32xf32, #tpu.memory_space<vmem>>, vector<1x32xf32>
    %436 = vector.extract_strided_slice %433 {offsets = [0, 0], sizes = [1, 32], strides = [1, 1]} : vector<16x32xf32> to vector<1x32xf32>
    %cst_184 = arith.constant dense<0.000000e+00> : vector<1x32xf32>
    %437 = tpu.matmul %436, %434, %cst_184 {dimension_numbers = #tpu.dot_dimension_numbers<[1], [0], [0], [1], [0, 0, 1, 1], [], []>} : vector<1x32xf32>, vector<32x32xf32>, vector<1x32xf32> -> vector<1x32xf32>
    %438 = arith.addf %437, %435 : vector<1x32xf32>
    %439 = math.tanh %438 : vector<1x32xf32>
    %c0_185 = arith.constant 0 : index
    %c0_186 = arith.constant 0 : index
    %440 = vector.load %arg18[%c0_185, %c0_186] : memref<2x32xf32, #tpu.memory_space<vmem>>, vector<1x32xf32>
    tpu.vector_store %arg18[%c0_185, %c0_186], %439 {strides = array<i32>} : memref<2x32xf32, #tpu.memory_space<vmem>>, vector<1x32xf32>,
    %441 = vector.extract_strided_slice %433 {offsets = [8, 0], sizes = [1, 32], strides = [1, 1]} : vector<16x32xf32> to vector<1x32xf32>
    %cst_187 = arith.constant dense<0.000000e+00> : vector<1x32xf32>
    %442 = tpu.matmul %441, %434, %cst_187 {dimension_numbers = #tpu.dot_dimension_numbers<[1], [0], [0], [1], [0, 0, 1, 1], [], []>} : vector<1x32xf32>, vector<32x32xf32>, vector<1x32xf32> -> vector<1x32xf32>
    %443 = arith.addf %442, %435 : vector<1x32xf32>
    %444 = math.tanh %443 : vector<1x32xf32>
    %c1_188 = arith.constant 1 : index
    %c0_189 = arith.constant 0 : index
    %445 = vector.load %arg18[%c1_188, %c0_189] : memref<2x32xf32, #tpu.memory_space<vmem>>, vector<1x32xf32>
    tpu.vector_store %arg18[%c1_188, %c0_189], %444 {strides = array<i32>} : memref<2x32xf32, #tpu.memory_space<vmem>>, vector<1x32xf32>,
    return
  }
}

</mosaic_0001>

<llo_original>
// kernel: _lambda_.1
$region0: #{_lambda_.1}
  #allocation0 [shape = 'u32[]', space=smem, size = 0x4, offset = 0x4, fixed_abs, tag = 'smem constant byte address 0x4 - core index']
  #allocation1 [shape = 'u32[72,128]{1,0:T(1,128)}', space=vmem, size = 0x9000, scoped, tag = 'internal scratch']
  %s0 = inlined_call_operand.vmem [shape: f32[16,32], index: 0, kind: input, shape index: {}]
  %s1 = inlined_call_operand.vmem [shape: f32[2,8], index: 1, kind: input, shape index: {}]
  %s2 = inlined_call_operand.vmem [shape: f32[1,32], index: 2, kind: input, shape index: {}]
  %s3 = inlined_call_operand.vmem [shape: f32[1,32], index: 3, kind: input, shape index: {}, may-alias: {3,17}]
  %s4 = inlined_call_operand.vmem [shape: f32[2,32,96], index: 4, kind: input, shape index: {}]
  %s5 = inlined_call_operand.vmem [shape: f32[2,1,96], index: 5, kind: input, shape index: {}]
  %s6 = inlined_call_operand.hbm [shape: f32[2,32,32], index: 6, kind: input, shape index: {}]
  %s7 = inlined_call_operand.vmem [shape: f32[2,1,32], index: 7, kind: input, shape index: {}, may-alias: {7,9,13,15}]
  %s8 = inlined_call_operand.vmem [shape: f32[2,1,32], index: 8, kind: input, shape index: {}, may-alias: {8,14}]
  %s9 = inlined_call_operand.vmem [shape: f32[2,1,32], index: 9, kind: input, shape index: {}, may-alias: {7,9,13,15}]
  %s10 = inlined_call_operand.hbm [shape: f32[2,32,64], index: 10, kind: input, shape index: {}]
  %s11 = inlined_call_operand.vmem [shape: f32[2,1,64], index: 11, kind: input, shape index: {}]
  %s12 = inlined_call_operand.vmem [shape: f32[2,64,32], index: 12, kind: input, shape index: {}]
  %s13 = inlined_call_operand.vmem [shape: f32[2,1,32], index: 13, kind: input, shape index: {}, may-alias: {7,9,13,15}]
  %s14 = inlined_call_operand.vmem [shape: f32[2,1,32], index: 14, kind: input, shape index: {}, may-alias: {8,14}]
  %s15 = inlined_call_operand.vmem [shape: f32[2,1,32], index: 15, kind: input, shape index: {}, may-alias: {7,9,13,15}]
  %s16 = inlined_call_operand.hbm [shape: f32[32,32], index: 16, kind: input, shape index: {}]
  %s17 = inlined_call_operand.vmem [shape: f32[1,32], index: 17, kind: input, shape index: {}, may-alias: {3,17}]
  %s18 = inlined_call_operand.hbm [shape: f32[2,32], index: 18, kind: output, shape index: {}]
  %s19 = sld [smem:[#allocation0]]
  $region94: #{_lambda_.1} parent=0
    _
  %s21 = ssub.s32 1, %s19
  %s22 = scalar_select 0, %s21, %s19
  $region1: #{_lambda_.1} parent=0
    #allocation2 [shape = 'u8[32768]{0}', space=vmem, size = 0x8000, scoped, tag = 'input window, operand 6, single buffered']
    #allocation3 [shape = 's32[1]{0}', space=sflag, size = 0x4, scoped, tag = 'scoped memory for _lambda_.1']
    #allocation4 [shape = 's32[1]{0}', space=sflag, size = 0x4, scoped, tag = 'scoped memory for _lambda_.1']
    #allocation5 [shape = 'u8[32768]{0}', space=vmem, size = 0x8000, scoped, tag = 'input window, operand 10, single buffered']
    #allocation6 [shape = 's32[1]{0}', space=sflag, size = 0x4, scoped, tag = 'scoped memory for _lambda_.1']
    #allocation7 [shape = 'u8[16384]{0}', space=vmem, size = 0x4000, scoped, tag = 'input window, operand 16, single buffered']
    #allocation8 [shape = 'u8[1024]{0}', space=vmem, size = 0x400, scoped, tag = 'output window, operand 0, single buffered']
    %23 = vsyncpa [#allocation3], 0
    %24 = vsyncpa [#allocation6], 0
    %25 = vsyncpa [#allocation4], 0
    // Predicated region
    $region2: #{_lambda_.1} parent=1 // pred_check
      _
    $region3: #{_lambda_.1} parent=1 // pred_check_branch
      %27 = sbr.rel (0) target = $region5
    $region4: #{_lambda_.1} parent=1 // pred_region
      _
    $region5: #{_lambda_.1} parent=1 // pred_fallthru
      _
    // Predicated region
    $region6: #{_lambda_.1} parent=1 // pred_check
      _
    $region7: #{_lambda_.1} parent=1 // pred_check_branch
      %29 = sbr.rel (0) target = $region9
    $region8: #{_lambda_.1} parent=1 // pred_region
      _
    $region9: #{_lambda_.1} parent=1 // pred_fallthru
      _
    // Predicated region
    $region10: #{_lambda_.1} parent=1 // pred_check
      _
    $region11: #{_lambda_.1} parent=1 // pred_check_branch
      %31 = sbr.rel (0) target = $region13
    $region12: #{_lambda_.1} parent=1 // pred_region
      _
    $region13: #{_lambda_.1} parent=1 // pred_fallthru
      _
    // Predicated region
    $region14: #{_lambda_.1} parent=1 // pred_check
      _
    $region15: #{_lambda_.1} parent=1 // pred_check_branch
      %33 = sbr.rel (0) target = $region17
    $region16: #{_lambda_.1} parent=1 // pred_region
      _
    $region17: #{_lambda_.1} parent=1 // pred_fallthru
      _
    // Predicated region
    $region18: #{_lambda_.1} parent=1 // pred_check
      _
    $region19: #{_lambda_.1} parent=1 // pred_check_branch
      %35 = sbr.rel (0) target = $region21
    $region20: #{_lambda_.1} parent=1 // pred_region
      _
    $region21: #{_lambda_.1} parent=1 // pred_fallthru
      _
    // Predicated region
    $region22: #{_lambda_.1} parent=1 // pred_check
      _
    $region23: #{_lambda_.1} parent=1 // pred_check_branch
      %37 = sbr.rel (0) target = $region25
    $region24: #{_lambda_.1} parent=1 // pred_region
      _
    $region25: #{_lambda_.1} parent=1 // pred_fallthru
      _
    // Predicated region
    $region26: #{_lambda_.1} parent=1 // pred_check
      _
    $region27: #{_lambda_.1} parent=1 // pred_check_branch
      %39 = sbr.rel (0) target = $region29
    $region28: #{_lambda_.1} parent=1 // pred_region
      %41 = vsyncadd [#allocation3], 0
      %s42 = sshll.u32 %s6, 4
      %s43 = int_to_ptr.hbm [resolvable:$true] %s42
      %s44 = sshll.u32 [#allocation2], 4
      %s45 = int_to_ptr.vmem [resolvable:$true] %s44
      %50 = dma.hbm_to_vmem [thread:$0]  %s43, 1024, %s45, [#allocation3], 128, 128, 8
    $region29: #{_lambda_.1} parent=1 // pred_fallthru
      _
    // Predicated region
    $region30: #{_lambda_.1} parent=1 // pred_check
      _
    $region31: #{_lambda_.1} parent=1 // pred_check_branch
      %52 = sbr.rel (0) target = $region33
    $region32: #{_lambda_.1} parent=1 // pred_region
      _
    $region33: #{_lambda_.1} parent=1 // pred_fallthru
      _
    // Predicated region
    $region34: #{_lambda_.1} parent=1 // pred_check
      _
    $region35: #{_lambda_.1} parent=1 // pred_check_branch
      %54 = sbr.rel (0) target = $region37
    $region36: #{_lambda_.1} parent=1 // pred_region
      _
    $region37: #{_lambda_.1} parent=1 // pred_fallthru
      _
    // Predicated region
    $region38: #{_lambda_.1} parent=1 // pred_check
      _
    $region39: #{_lambda_.1} parent=1 // pred_check_branch
      %56 = sbr.rel (0) target = $region41
    $region40: #{_lambda_.1} parent=1 // pred_region
      _
    $region41: #{_lambda_.1} parent=1 // pred_fallthru
      _
    // Predicated region
    $region42: #{_lambda_.1} parent=1 // pred_check
      _
    $region43: #{_lambda_.1} parent=1 // pred_check_branch
      %58 = sbr.rel (0) target = $region45
    $region44: #{_lambda_.1} parent=1 // pred_region
      %60 = vsyncadd [#allocation6], 0
      %s61 = sshll.u32 %s10, 4
      %s62 = int_to_ptr.hbm [resolvable:$true] %s61
      %s63 = sshll.u32 [#allocation5], 4
      %s64 = int_to_ptr.vmem [resolvable:$true] %s63
      %69 = dma.hbm_to_vmem [thread:$0]  %s62, 1024, %s64, [#allocation6], 128, 128, 8
    $region45: #{_lambda_.1} parent=1 // pred_fallthru
      _
    // Predicated region
    $region46: #{_lambda_.1} parent=1 // pred_check
      _
    $region47: #{_lambda_.1} parent=1 // pred_check_branch
      %71 = sbr.rel (0) target = $region49
    $region48: #{_lambda_.1} parent=1 // pred_region
      _
    $region49: #{_lambda_.1} parent=1 // pred_fallthru
      _
    // Predicated region
    $region50: #{_lambda_.1} parent=1 // pred_check
      _
    $region51: #{_lambda_.1} parent=1 // pred_check_branch
      %73 = sbr.rel (0) target = $region53
    $region52: #{_lambda_.1} parent=1 // pred_region
      _
    $region53: #{_lambda_.1} parent=1 // pred_fallthru
      _
    // Predicated region
    $region54: #{_lambda_.1} parent=1 // pred_check
      _
    $region55: #{_lambda_.1} parent=1 // pred_check_branch
      %75 = sbr.rel (0) target = $region57
    $region56: #{_lambda_.1} parent=1 // pred_region
      _
    $region57: #{_lambda_.1} parent=1 // pred_fallthru
      _
    // Predicated region
    $region58: #{_lambda_.1} parent=1 // pred_check
      _
    $region59: #{_lambda_.1} parent=1 // pred_check_branch
      %77 = sbr.rel (0) target = $region61
    $region60: #{_lambda_.1} parent=1 // pred_region
      _
    $region61: #{_lambda_.1} parent=1 // pred_fallthru
      _
    // Predicated region
    $region62: #{_lambda_.1} parent=1 // pred_check
      _
    $region63: #{_lambda_.1} parent=1 // pred_check_branch
      %79 = sbr.rel (0) target = $region65
    $region64: #{_lambda_.1} parent=1 // pred_region
      _
    $region65: #{_lambda_.1} parent=1 // pred_fallthru
      _
    // Predicated region
    $region66: #{_lambda_.1} parent=1 // pred_check
      _
    $region67: #{_lambda_.1} parent=1 // pred_check_branch
      %81 = sbr.rel (0) target = $region69
    $region68: #{_lambda_.1} parent=1 // pred_region
      %83 = vsyncadd [#allocation6], 0
      %s84 = sshll.u32 %s16, 4
      %s85 = int_to_ptr.hbm [resolvable:$true] %s84
      %s86 = sshll.u32 [#allocation7], 4
      %s87 = int_to_ptr.vmem [resolvable:$true] %s86
      %92 = dma.hbm_to_vmem [thread:$0]  %s85, 512, %s87, [#allocation6], 128, 128, 8
    $region69: #{_lambda_.1} parent=1 // pred_fallthru
      _
    // Predicated region
    $region70: #{_lambda_.1} parent=1 // pred_check
      _
    $region71: #{_lambda_.1} parent=1 // pred_check_branch
      %94 = sbr.rel (0) target = $region73
    $region72: #{_lambda_.1} parent=1 // pred_region
      _
    $region73: #{_lambda_.1} parent=1 // pred_fallthru
      _
    // Predicated region
    $region74: #{_lambda_.1} parent=1 // pred_check
      _
    $region75: #{_lambda_.1} parent=1 // pred_check_branch
      %96 = sbr.rel (0) target = $region77
    $region76: #{_lambda_.1} parent=1 // pred_region
      %98 = dma.done [#allocation3], 1024
    $region77: #{_lambda_.1} parent=1 // pred_fallthru
      _
    // Predicated region
    $region78: #{_lambda_.1} parent=1 // pred_check
      _
    $region79: #{_lambda_.1} parent=1 // pred_check_branch
      %100 = sbr.rel (0) target = $region81
    $region80: #{_lambda_.1} parent=1 // pred_region
      %102 = dma.done [#allocation6], 1024
    $region81: #{_lambda_.1} parent=1 // pred_fallthru
      _
    // Predicated region
    $region82: #{_lambda_.1} parent=1 // pred_check
      _
    $region83: #{_lambda_.1} parent=1 // pred_check_branch
      %104 = sbr.rel (0) target = $region85
    $region84: #{_lambda_.1} parent=1 // pred_region
      %106 = dma.done [#allocation6], 512
    $region85: #{_lambda_.1} parent=1 // pred_fallthru
      _
    %v107 = vld [vmem:[%s0] sm:$0xff]
    %v108 = vld [vmem:[%s0 + $0x8] sm:$0xff]
    %v109 = vld [vmem:[%s2] sm:$0x1]
    %v110 = vld [vmem:[%s3] sm:$0x1]
    %vm111 = vcmask 261120
    %v112 = vsel %vm111, %v107, 0.0
    %113 = vadd.xlane.f32.xlu0 %v112
    %v114 = vpop.xlane.xlu0 %113
    %v115 = vsel %vm111, %v108, 0.0
    %116 = vadd.xlane.f32.xlu0 %v115
    %v117 = vpop.xlane.xlu0 %116
    %v118 = vrcp.pop 32.0
    %v119 = vmul.f32 32.0, %v118
    %v120 = vsub.f32 1.0, %v119
    %v121 = vmul.f32 %v118, %v120
    %v122 = vadd.f32 %v118, %v121
    %vm123 = vweird.f32 %v118
    %v124 = vsel %vm123, %v118, %v122
    %v125 = vmul.f32 %v114, %v124
    %v126 = vmul.f32 %v117, %v124
    %v127 = vsub.f32 %v107, %v125
    %v128 = vsub.f32 %v108, %v126
    %v129 = vmul.f32 %v127, %v127
    %v130 = vmul.f32 %v128, %v128
    %v131 = vsel %vm111, %v129, 0.0
    %132 = vadd.xlane.f32.xlu0 %v131
    %v133 = vpop.xlane.xlu0 %132
    %v134 = vsel %vm111, %v130, 0.0
    %135 = vadd.xlane.f32.xlu0 %v134
    %v136 = vpop.xlane.xlu0 %135
    %v137 = vmul.f32 %v133, %v124
    %v138 = vmul.f32 %v136, %v124
    %v139 = vadd.f32 %v137, 1e-12
    %v140 = vadd.f32 %v138, 1e-12
    %v141 = vrsqrt.pop %v139
    %v142 = vmul.f32 %v141, %v139
    %v143 = vmul.f32 %v142, %v141
    %v144 = vmul.f32 0.5, %v143
    %v145 = vsub.f32 1.5, %v144
    %v146 = vmul.f32 %v141, %v145
    %vm147 = vweird.f32 %v139
    %vm148 = vweird.f32 %v141
    %vm149 = vmor %vm147, %vm148
    %v150 = vsel %vm149, %v141, %v146
    %v151 = vrsqrt.pop %v140
    %v152 = vmul.f32 %v151, %v140
    %v153 = vmul.f32 %v152, %v151
    %v154 = vmul.f32 0.5, %v153
    %v155 = vsub.f32 1.5, %v154
    %v156 = vmul.f32 %v151, %v155
    %vm157 = vweird.f32 %v140
    %vm158 = vweird.f32 %v151
    %vm159 = vmor %vm157, %vm158
    %v160 = vsel %vm159, %v151, %v156
    %v161 = vmul.f32 %v127, %v150
    %v162 = vmul.f32 %v128, %v160
    %v164 = vperm.slane %v109, 0
    %v166 = vmul.f32 %v161, %v164
    %v167 = vmul.f32 %v162, %v164
    %v169 = vperm.slane %v110, 0
    %v171 = vadd.f32 %v166, %v169
    %v172 = vadd.f32 %v167, %v169
    %v173 = vld [vmem:[%s1] sm:$0x3]
    %v174 = vsub.f32 1.0, %v173
    %v175 = vmul.f32 %v174, -1e+09
    %v176 = vld [vmem:[%s4] sm:$0xff]
    %v177 = vld [vmem:[%s4 + $0x8] sm:$0xff]
    %v178 = vld [vmem:[%s4 + $0x10] sm:$0xff]
    %v179 = vld [vmem:[%s4 + $0x18] sm:$0xff]
    %v180 = vld [vmem:[%s5] sm:$0x1]
    %v181 = vld [vmem:[#allocation2] sm:$0xff]
    %v182 = vld [vmem:[#allocation2 + $0x8] sm:$0xff]
    %v183 = vld [vmem:[#allocation2 + $0x10] sm:$0xff]
    %v184 = vld [vmem:[#allocation2 + $0x18] sm:$0xff]
    %v185 = vld [vmem:[#allocation5] sm:$0xff]
    %v186 = vld [vmem:[#allocation5 + $0x8] sm:$0xff]
    %v187 = vld [vmem:[#allocation5 + $0x10] sm:$0xff]
    %v188 = vld [vmem:[#allocation5 + $0x18] sm:$0xff]
    %v189 = vld [vmem:[%s12] sm:$0xff]
    %v190 = vld [vmem:[%s12 + $0x8] sm:$0xff]
    %v191 = vld [vmem:[%s12 + $0x10] sm:$0xff]
    %v192 = vld [vmem:[%s12 + $0x18] sm:$0xff]
    %v193 = vld [vmem:[%s12 + $0x20] sm:$0xff]
    %v194 = vld [vmem:[%s12 + $0x28] sm:$0xff]
    %v195 = vld [vmem:[%s12 + $0x30] sm:$0xff]
    %v196 = vld [vmem:[%s12 + $0x38] sm:$0xff]
    %v198 = vperm.slane %v180, 0
    %v201 = vsel %vm111, %v171, 0
    %v204 = vsel %vm111, %v172, 0
    %206 = vmatpush.msra.mxu0 0.0
    %207 = vmatpush.msra.mxu0 0.0
    %208 = vmatpush.msra.mxu0 0.0
    %209 = vmatpush.msra.mxu0 0.0
    %210 = vmatpush.msra.mxu0 0.0
    %211 = vmatpush.msra.mxu0 0.0
    %212 = vmatpush.msra.mxu0 0.0
    %213 = vmatpush.msra.mxu0 0.0
    %214 = vmatpush.msra.mxu0 0.0
    %215 = vmatpush.msra.mxu0 0.0
    %216 = vmatpush.msra.mxu0 0.0
    %217 = vmatpush.msra.mxu0 0.0
    %218 = vmatpush.msra.mxu0 %v179
    %219 = vmatpush.msra.mxu0 %v178
    %220 = vmatpush.msra.mxu0 %v177
    %221 = vmatpush.msra.mxu0 %v176
    %222 = vmatmul.f32.gmra.mxu0 %v201
    %v223 = vpop.f32.mrf.mxu0
    %v224 = vadd.f32 %v198, %v223
    %225 = vmatmul.f32.gmra.mxu0 %v204
    %v226 = vpop.f32.mrf.mxu0
    %v227 = vadd.f32 %v198, %v226
    %228 = vdwg.mxu0
    %v229 = vperm.slane %v175, 0
    %231 = vrot.lane.b32.xlu0 %v224, 96
    %v232 = vpop.permute.xlu0 %231
    %vm233 = vcmask 130048
    %v234 = vsel %vm233, %v224, 0
    %v236 = vsel %vm233, %v232, 0
    %238 = vmatpush.xpose.msra.mxu0 0.0
    %239 = vmatpush.xpose.msra.mxu0 0.0
    %240 = vmatpush.xpose.msra.mxu0 0.0
    %241 = vmatpush.xpose.msra.mxu0 0.0
    %242 = vmatpush.xpose.msra.mxu0 0.0
    %243 = vmatpush.xpose.msra.mxu0 0.0
    %244 = vmatpush.xpose.msra.mxu0 0.0
    %245 = vmatpush.xpose.msra.mxu0 0.0
    %246 = vmatpush.xpose.msra.mxu0 0.0
    %247 = vmatpush.xpose.msra.mxu0 0.0
    %248 = vmatpush.xpose.msra.mxu0 0.0
    %249 = vmatpush.xpose.msra.mxu0 0.0
    %250 = vmatpush.xpose.msra.mxu0 0.0
    %251 = vmatpush.xpose.msra.mxu0 0.0
    %252 = vmatpush.xpose.msra.mxu0 0.0
    %253 = vmatpush.xpose.msra.mxu0 %v236
    %254 = vmatmul.f32.gmra.mxu0 %v234
    %v255 = vpop.f32.mrf.mxu0
    %v256 = vadd.f32 %v229, %v255
    %257 = vdwg.mxu0
    %vm258 = vcmask 64512
    %v259 = vsel %vm258, %v256, -inf
    %260 = vmax.xlane.f32.xlu0 %v259
    %v261 = vpop.xlane.xlu0 %260
    %v262 = vsub.f32 %v256, %v261
    %v263 = vmul.f32 %v262, 1.442695
    %v264 = vpow.pop %v263
    %v265 = vsel %vm258, %v264, 0.0
    %266 = vadd.xlane.f32.xlu0 %v265
    %v267 = vpop.xlane.xlu0 %266
    %v268 = vrcp.pop %v267
    %v269 = vmul.f32 %v264, %v268
    %270 = vrot.lane.b32.xlu0 %v224, 64
    %v271 = vpop.permute.xlu0 %270
    %v274 = vsel %vm258, %v269, 0
    %276 = vmatpush.msra.mxu0 0.0
    %277 = vmatpush.msra.mxu0 0.0
    %278 = vmatpush.msra.mxu0 0.0
    %279 = vmatpush.msra.mxu0 0.0
    %280 = vmatpush.msra.mxu0 0.0
    %281 = vmatpush.msra.mxu0 0.0
    %282 = vmatpush.msra.mxu0 0.0
    %283 = vmatpush.msra.mxu0 0.0
    %284 = vmatpush.msra.mxu0 0.0
    %285 = vmatpush.msra.mxu0 0.0
    %286 = vmatpush.msra.mxu0 0.0
    %287 = vmatpush.msra.mxu0 0.0
    %288 = vmatpush.msra.mxu0 0.0
    %289 = vmatpush.msra.mxu0 0.0
    %290 = vmatpush.msra.mxu0 0.0
    %291 = vmatpush.msra.mxu0 %v271
    %292 = vmatmul.f32.gmra.mxu0 %v274
    %v293 = vpop.f32.mrf.mxu0
    %v294 = vadd.f32 0.0, %v293
    %295 = vdwg.mxu0
    %296 = vrot.lane.b32.xlu0 %v224, 112
    %v297 = vpop.permute.xlu0 %296
    %298 = vrot.lane.b32.xlu0 %v224, 80
    %v299 = vpop.permute.xlu0 %298
    %v300 = vsel %vm233, %v297, 0
    %v302 = vsel %vm233, %v299, 0
    %304 = vmatpush.xpose.msra.mxu0 0.0
    %305 = vmatpush.xpose.msra.mxu0 0.0
    %306 = vmatpush.xpose.msra.mxu0 0.0
    %307 = vmatpush.xpose.msra.mxu0 0.0
    %308 = vmatpush.xpose.msra.mxu0 0.0
    %309 = vmatpush.xpose.msra.mxu0 0.0
    %310 = vmatpush.xpose.msra.mxu0 0.0
    %311 = vmatpush.xpose.msra.mxu0 0.0
    %312 = vmatpush.xpose.msra.mxu0 0.0
    %313 = vmatpush.xpose.msra.mxu0 0.0
    %314 = vmatpush.xpose.msra.mxu0 0.0
    %315 = vmatpush.xpose.msra.mxu0 0.0
    %316 = vmatpush.xpose.msra.mxu0 0.0
    %317 = vmatpush.xpose.msra.mxu0 0.0
    %318 = vmatpush.xpose.msra.mxu0 0.0
    %319 = vmatpush.xpose.msra.mxu0 %v302
    %320 = vmatmul.f32.gmra.mxu0 %v300
    %v321 = vpop.f32.mrf.mxu0
    %v322 = vadd.f32 %v229, %v321
    %323 = vdwg.mxu0
    %v324 = vsel %vm258, %v322, -inf
    %325 = vmax.xlane.f32.xlu0 %v324
    %v326 = vpop.xlane.xlu0 %325
    %v327 = vsub.f32 %v322, %v326
    %v328 = vmul.f32 %v327, 1.442695
    %v329 = vpow.pop %v328
    %v330 = vsel %vm258, %v329, 0.0
    %331 = vadd.xlane.f32.xlu0 %v330
    %v332 = vpop.xlane.xlu0 %331
    %v333 = vrcp.pop %v332
    %v334 = vmul.f32 %v329, %v333
    %335 = vrot.lane.b32.xlu0 %v224, 48
    %v336 = vpop.permute.xlu0 %335
    %v339 = vsel %vm258, %v334, 0
    %341 = vmatpush.msra.mxu0 0.0
    %342 = vmatpush.msra.mxu0 0.0
    %343 = vmatpush.msra.mxu0 0.0
    %344 = vmatpush.msra.mxu0 0.0
    %345 = vmatpush.msra.mxu0 0.0
    %346 = vmatpush.msra.mxu0 0.0
    %347 = vmatpush.msra.mxu0 0.0
    %348 = vmatpush.msra.mxu0 0.0
    %349 = vmatpush.msra.mxu0 0.0
    %350 = vmatpush.msra.mxu0 0.0
    %351 = vmatpush.msra.mxu0 0.0
    %352 = vmatpush.msra.mxu0 0.0
    %353 = vmatpush.msra.mxu0 0.0
    %354 = vmatpush.msra.mxu0 0.0
    %355 = vmatpush.msra.mxu0 0.0
    %356 = vmatpush.msra.mxu0 %v336
    %357 = vmatmul.f32.gmra.mxu0 %v339
    %v358 = vpop.f32.mrf.mxu0
    %v359 = vadd.f32 0.0, %v358
    %360 = vdwg.mxu0
    %v362 = vsel %vm233, %v359, 0
    %364 = vmatpush.msra.mxu0 0.0
    %365 = vmatpush.msra.mxu0 0.0
    %366 = vmatpush.msra.mxu0 0.0
    %367 = vmatpush.msra.mxu0 0.0
    %368 = vmatpush.msra.mxu0 0.0
    %369 = vmatpush.msra.mxu0 0.0
    %370 = vmatpush.msra.mxu0 0.0
    %371 = vmatpush.msra.mxu0 0.0
    %372 = vmatpush.msra.mxu0 0.0
    %373 = vmatpush.msra.mxu0 0.0
    %374 = vmatpush.msra.mxu0 0.0
    %375 = vmatpush.msra.mxu0 0.0
    %376 = vmatpush.msra.mxu0 0.0
    %377 = vmatpush.msra.mxu0 0.0
    %378 = vmatpush.msra.mxu0 %v184
    %379 = vmatpush.msra.mxu0 %v183
    %380 = vmatmul.f32.gmra.mxu0 %v362
    %v381 = vpop.f32.mrf.mxu0
    %v382 = vadd.f32 0.0, %v381
    %383 = vdwg.mxu0
    %v385 = vsel %vm233, %v294, 0
    %387 = vmatpush.msra.mxu0 0.0
    %388 = vmatpush.msra.mxu0 0.0
    %389 = vmatpush.msra.mxu0 0.0
    %390 = vmatpush.msra.mxu0 0.0
    %391 = vmatpush.msra.mxu0 0.0
    %392 = vmatpush.msra.mxu0 0.0
    %393 = vmatpush.msra.mxu0 0.0
    %394 = vmatpush.msra.mxu0 0.0
    %395 = vmatpush.msra.mxu0 0.0
    %396 = vmatpush.msra.mxu0 0.0
    %397 = vmatpush.msra.mxu0 0.0
    %398 = vmatpush.msra.mxu0 0.0
    %399 = vmatpush.msra.mxu0 0.0
    %400 = vmatpush.msra.mxu0 0.0
    %401 = vmatpush.msra.mxu0 %v182
    %402 = vmatpush.msra.mxu0 %v181
    %403 = vmatmul.f32.gmra.mxu0 %v385
    %v404 = vpop.f32.mrf.mxu0
    %v405 = vadd.f32 %v382, %v404
    %406 = vdwg.mxu0
    %v407 = vperm.slane %v175, 1
    %409 = vrot.lane.b32.xlu0 %v227, 96
    %v410 = vpop.permute.xlu0 %409
    %v411 = vsel %vm233, %v227, 0
    %v413 = vsel %vm233, %v410, 0
    %415 = vmatpush.xpose.msra.mxu0 0.0
    %416 = vmatpush.xpose.msra.mxu0 0.0
    %417 = vmatpush.xpose.msra.mxu0 0.0
    %418 = vmatpush.xpose.msra.mxu0 0.0
    %419 = vmatpush.xpose.msra.mxu0 0.0
    %420 = vmatpush.xpose.msra.mxu0 0.0
    %421 = vmatpush.xpose.msra.mxu0 0.0
    %422 = vmatpush.xpose.msra.mxu0 0.0
    %423 = vmatpush.xpose.msra.mxu0 0.0
    %424 = vmatpush.xpose.msra.mxu0 0.0
    %425 = vmatpush.xpose.msra.mxu0 0.0
    %426 = vmatpush.xpose.msra.mxu0 0.0
    %427 = vmatpush.xpose.msra.mxu0 0.0
    %428 = vmatpush.xpose.msra.mxu0 0.0
    %429 = vmatpush.xpose.msra.mxu0 0.0
    %430 = vmatpush.xpose.msra.mxu0 %v413
    %431 = vmatmul.f32.gmra.mxu0 %v411
    %v432 = vpop.f32.mrf.mxu0
    %v433 = vadd.f32 %v407, %v432
    %434 = vdwg.mxu0
    %v435 = vsel %vm258, %v433, -inf
    %436 = vmax.xlane.f32.xlu0 %v435
    %v437 = vpop.xlane.xlu0 %436
    %v438 = vsub.f32 %v433, %v437
    %v439 = vmul.f32 %v438, 1.442695
    %v440 = vpow.pop %v439
    %v441 = vsel %vm258, %v440, 0.0
    %442 = vadd.xlane.f32.xlu0 %v441
    %v443 = vpop.xlane.xlu0 %442
    %v444 = vrcp.pop %v443
    %v445 = vmul.f32 %v440, %v444
    %446 = vrot.lane.b32.xlu0 %v227, 64
    %v447 = vpop.permute.xlu0 %446
    %v450 = vsel %vm258, %v445, 0
    %452 = vmatpush.msra.mxu0 0.0
    %453 = vmatpush.msra.mxu0 0.0
    %454 = vmatpush.msra.mxu0 0.0
    %455 = vmatpush.msra.mxu0 0.0
    %456 = vmatpush.msra.mxu0 0.0
    %457 = vmatpush.msra.mxu0 0.0
    %458 = vmatpush.msra.mxu0 0.0
    %459 = vmatpush.msra.mxu0 0.0
    %460 = vmatpush.msra.mxu0 0.0
    %461 = vmatpush.msra.mxu0 0.0
    %462 = vmatpush.msra.mxu0 0.0
    %463 = vmatpush.msra.mxu0 0.0
    %464 = vmatpush.msra.mxu0 0.0
    %465 = vmatpush.msra.mxu0 0.0
    %466 = vmatpush.msra.mxu0 0.0
    %467 = vmatpush.msra.mxu0 %v447
    %468 = vmatmul.f32.gmra.mxu0 %v450
    %v469 = vpop.f32.mrf.mxu0
    %v470 = vadd.f32 0.0, %v469
    %471 = vdwg.mxu0
    %472 = vrot.lane.b32.xlu0 %v227, 112
    %v473 = vpop.permute.xlu0 %472
    %474 = vrot.lane.b32.xlu0 %v227, 80
    %v475 = vpop.permute.xlu0 %474
    %v476 = vsel %vm233, %v473, 0
    %v478 = vsel %vm233, %v475, 0
    %480 = vmatpush.xpose.msra.mxu0 0.0
    %481 = vmatpush.xpose.msra.mxu0 0.0
    %482 = vmatpush.xpose.msra.mxu0 0.0
    %483 = vmatpush.xpose.msra.mxu0 0.0
    %484 = vmatpush.xpose.msra.mxu0 0.0
    %485 = vmatpush.xpose.msra.mxu0 0.0
    %486 = vmatpush.xpose.msra.mxu0 0.0
    %487 = vmatpush.xpose.msra.mxu0 0.0
    %488 = vmatpush.xpose.msra.mxu0 0.0
    %489 = vmatpush.xpose.msra.mxu0 0.0
    %490 = vmatpush.xpose.msra.mxu0 0.0
    %491 = vmatpush.xpose.msra.mxu0 0.0
    %492 = vmatpush.xpose.msra.mxu0 0.0
    %493 = vmatpush.xpose.msra.mxu0 0.0
    %494 = vmatpush.xpose.msra.mxu0 0.0
    %495 = vmatpush.xpose.msra.mxu0 %v478
    %496 = vmatmul.f32.gmra.mxu0 %v476
    %v497 = vpop.f32.mrf.mxu0
    %v498 = vadd.f32 %v407, %v497
    %499 = vdwg.mxu0
    %v500 = vsel %vm258, %v498, -inf
    %501 = vmax.xlane.f32.xlu0 %v500
    %v502 = vpop.xlane.xlu0 %501
    %v503 = vsub.f32 %v498, %v502
    %v504 = vmul.f32 %v503, 1.442695
    %v505 = vpow.pop %v504
    %v506 = vsel %vm258, %v505, 0.0
    %507 = vadd.xlane.f32.xlu0 %v506
    %v508 = vpop.xlane.xlu0 %507
    %v509 = vrcp.pop %v508
    %v510 = vmul.f32 %v505, %v509
    %511 = vrot.lane.b32.xlu0 %v227, 48
    %v512 = vpop.permute.xlu0 %511
    %v515 = vsel %vm258, %v510, 0
    %517 = vmatpush.msra.mxu0 0.0
    %518 = vmatpush.msra.mxu0 0.0
    %519 = vmatpush.msra.mxu0 0.0
    %520 = vmatpush.msra.mxu0 0.0
    %521 = vmatpush.msra.mxu0 0.0
    %522 = vmatpush.msra.mxu0 0.0
    %523 = vmatpush.msra.mxu0 0.0
    %524 = vmatpush.msra.mxu0 0.0
    %525 = vmatpush.msra.mxu0 0.0
    %526 = vmatpush.msra.mxu0 0.0
    %527 = vmatpush.msra.mxu0 0.0
    %528 = vmatpush.msra.mxu0 0.0
    %529 = vmatpush.msra.mxu0 0.0
    %530 = vmatpush.msra.mxu0 0.0
    %531 = vmatpush.msra.mxu0 0.0
    %532 = vmatpush.msra.mxu0 %v512
    %533 = vmatmul.f32.gmra.mxu0 %v515
    %v534 = vpop.f32.mrf.mxu0
    %v535 = vadd.f32 0.0, %v534
    %536 = vdwg.mxu0
    %v538 = vsel %vm233, %v535, 0
    %540 = vmatpush.msra.mxu0 0.0
    %541 = vmatpush.msra.mxu0 0.0
    %542 = vmatpush.msra.mxu0 0.0
    %543 = vmatpush.msra.mxu0 0.0
    %544 = vmatpush.msra.mxu0 0.0
    %545 = vmatpush.msra.mxu0 0.0
    %546 = vmatpush.msra.mxu0 0.0
    %547 = vmatpush.msra.mxu0 0.0
    %548 = vmatpush.msra.mxu0 0.0
    %549 = vmatpush.msra.mxu0 0.0
    %550 = vmatpush.msra.mxu0 0.0
    %551 = vmatpush.msra.mxu0 0.0
    %552 = vmatpush.msra.mxu0 0.0
    %553 = vmatpush.msra.mxu0 0.0
    %554 = vmatpush.msra.mxu0 %v184
    %555 = vmatpush.msra.mxu0 %v183
    %556 = vmatmul.f32.gmra.mxu0 %v538
    %v557 = vpop.f32.mrf.mxu0
    %v558 = vadd.f32 0.0, %v557
    %559 = vdwg.mxu0
    %v561 = vsel %vm233, %v470, 0
    %563 = vmatpush.msra.mxu0 0.0
    %564 = vmatpush.msra.mxu0 0.0
    %565 = vmatpush.msra.mxu0 0.0
    %566 = vmatpush.msra.mxu0 0.0
    %567 = vmatpush.msra.mxu0 0.0
    %568 = vmatpush.msra.mxu0 0.0
    %569 = vmatpush.msra.mxu0 0.0
    %570 = vmatpush.msra.mxu0 0.0
    %571 = vmatpush.msra.mxu0 0.0
    %572 = vmatpush.msra.mxu0 0.0
    %573 = vmatpush.msra.mxu0 0.0
    %574 = vmatpush.msra.mxu0 0.0
    %575 = vmatpush.msra.mxu0 0.0
    %576 = vmatpush.msra.mxu0 0.0
    %577 = vmatpush.msra.mxu0 %v182
    %578 = vmatpush.msra.mxu0 %v181
    %579 = vmatmul.f32.gmra.mxu0 %v561
    %v580 = vpop.f32.mrf.mxu0
    %v581 = vadd.f32 %v558, %v580
    %582 = vdwg.mxu0
    %v583 = vld [vmem:[%s7] sm:$0x1]
    %v585 = vperm.slane %v583, 0
    %v587 = vadd.f32 %v405, %v585
    %v588 = vadd.f32 %v581, %v585
    %v589 = vadd.f32 %v587, %v171
    %v590 = vadd.f32 %v588, %v172
    %v591 = vld [vmem:[%s8] sm:$0x1]
    %v592 = vld [vmem:[%s9] sm:$0x1]
    %v593 = vsel %vm111, %v589, 0.0
    %594 = vadd.xlane.f32.xlu0 %v593
    %v595 = vpop.xlane.xlu0 %594
    %v596 = vsel %vm111, %v590, 0.0
    %597 = vadd.xlane.f32.xlu0 %v596
    %v598 = vpop.xlane.xlu0 %597
    %v599 = vmul.f32 %v595, %v124
    %v600 = vmul.f32 %v598, %v124
    %v601 = vsub.f32 %v589, %v599
    %v602 = vsub.f32 %v590, %v600
    %v603 = vmul.f32 %v601, %v601
    %v604 = vmul.f32 %v602, %v602
    %v605 = vsel %vm111, %v603, 0.0
    %606 = vadd.xlane.f32.xlu0 %v605
    %v607 = vpop.xlane.xlu0 %606
    %v608 = vsel %vm111, %v604, 0.0
    %609 = vadd.xlane.f32.xlu0 %v608
    %v610 = vpop.xlane.xlu0 %609
    %v611 = vmul.f32 %v607, %v124
    %v612 = vmul.f32 %v610, %v124
    %v613 = vadd.f32 %v611, 1e-12
    %v614 = vadd.f32 %v612, 1e-12
    %v615 = vrsqrt.pop %v613
    %v616 = vmul.f32 %v615, %v613
    %v617 = vmul.f32 %v616, %v615
    %v618 = vmul.f32 0.5, %v617
    %v619 = vsub.f32 1.5, %v618
    %v620 = vmul.f32 %v615, %v619
    %vm621 = vweird.f32 %v613
    %vm622 = vweird.f32 %v615
    %vm623 = vmor %vm621, %vm622
    %v624 = vsel %vm623, %v615, %v620
    %v625 = vrsqrt.pop %v614
    %v626 = vmul.f32 %v625, %v614
    %v627 = vmul.f32 %v626, %v625
    %v628 = vmul.f32 0.5, %v627
    %v629 = vsub.f32 1.5, %v628
    %v630 = vmul.f32 %v625, %v629
    %vm631 = vweird.f32 %v614
    %vm632 = vweird.f32 %v625
    %vm633 = vmor %vm631, %vm632
    %v634 = vsel %vm633, %v625, %v630
    %v635 = vmul.f32 %v601, %v624
    %v636 = vmul.f32 %v602, %v634
    %v638 = vperm.slane %v591, 0
    %v640 = vmul.f32 %v635, %v638
    %v641 = vmul.f32 %v636, %v638
    %v643 = vperm.slane %v592, 0
    %v645 = vadd.f32 %v640, %v643
    %v646 = vadd.f32 %v641, %v643
    %v647 = vld [vmem:[%s11] sm:$0x1]
    %v649 = vperm.slane %v647, 0
    %v652 = vsel %vm111, %v645, 0
    %v655 = vsel %vm111, %v646, 0
    %657 = vmatpush.msra.mxu0 0.0
    %658 = vmatpush.msra.mxu0 0.0
    %659 = vmatpush.msra.mxu0 0.0
    %660 = vmatpush.msra.mxu0 0.0
    %661 = vmatpush.msra.mxu0 0.0
    %662 = vmatpush.msra.mxu0 0.0
    %663 = vmatpush.msra.mxu0 0.0
    %664 = vmatpush.msra.mxu0 0.0
    %665 = vmatpush.msra.mxu0 0.0
    %666 = vmatpush.msra.mxu0 0.0
    %667 = vmatpush.msra.mxu0 0.0
    %668 = vmatpush.msra.mxu0 0.0
    %669 = vmatpush.msra.mxu0 %v188
    %670 = vmatpush.msra.mxu0 %v187
    %671 = vmatpush.msra.mxu0 %v186
    %672 = vmatpush.msra.mxu0 %v185
    %673 = vmatmul.f32.gmra.mxu0 %v652
    %v674 = vpop.f32.mrf.mxu0
    %v675 = vadd.f32 %v649, %v674
    %676 = vmatmul.f32.gmra.mxu0 %v655
    %v677 = vpop.f32.mrf.mxu0
    %v678 = vadd.f32 %v649, %v677
    %679 = vdwg.mxu0
    %v680 = vmul.f32 %v675, 0.5
    %v681 = vmul.f32 %v678, 0.5
    %v682 = vmul.f32 %v675, 0.70710677
    %v683 = vmul.f32 %v678, 0.70710677
    %v684 = vand.u32 2147483647, %v682
    %v685 = vand.u32 2147483647, %v683
    %v686 = vmul.f32 %v684, 0.3275911
    %v687 = vmul.f32 %v685, 0.3275911
    %v688 = vadd.f32 %v686, 1.0
    %v689 = vadd.f32 %v687, 1.0
    %v690 = vrcp.pop %v688
    %v691 = vmul.f32 %v688, %v690
    %v692 = vsub.f32 1.0, %v691
    %v693 = vmul.f32 %v690, %v692
    %v694 = vadd.f32 %v690, %v693
    %vm695 = vweird.f32 %v688
    %vm696 = vweird.f32 %v690
    %vm697 = vmor %vm695, %vm696
    %v698 = vsel %vm697, %v690, %v694
    %v699 = vand.u32 2147483647, %v688
    %vm700 = vcmp.eq.f32.partialorder %v699, 8.507059e+37
    %v701 = vand.u32 %v688, 2147483648
    %v702 = vor.u32 1.1754944e-38, %v701
    %v703 = vsel %vm700, %v702, %v698
    %v704 = vmul.f32 1.0, %v703
    %v705 = vrcp.pop %v689
    %v706 = vmul.f32 %v689, %v705
    %v707 = vsub.f32 1.0, %v706
    %v708 = vmul.f32 %v705, %v707
    %v709 = vadd.f32 %v705, %v708
    %vm710 = vweird.f32 %v689
    %vm711 = vweird.f32 %v705
    %vm712 = vmor %vm710, %vm711
    %v713 = vsel %vm712, %v705, %v709
    %v714 = vand.u32 2147483647, %v689
    %vm715 = vcmp.eq.f32.partialorder %v714, 8.507059e+37
    %v716 = vand.u32 %v689, 2147483648
    %v717 = vor.u32 1.1754944e-38, %v716
    %v718 = vsel %vm715, %v717, %v713
    %v719 = vmul.f32 1.0, %v718
    %v720 = vmul.f32 %v704, 1.0614054
    %v721 = vmul.f32 %v719, 1.0614054
    %v722 = vadd.f32 %v720, -1.4531521
    %v723 = vadd.f32 %v721, -1.4531521
    %v724 = vmul.f32 %v722, %v704
    %v725 = vmul.f32 %v723, %v719
    %v726 = vadd.f32 %v724, 1.4214138
    %v727 = vadd.f32 %v725, 1.4214138
    %v728 = vmul.f32 %v726, %v704
    %v729 = vmul.f32 %v727, %v719
    %v730 = vadd.f32 %v728, -0.28449672
    %v731 = vadd.f32 %v729, -0.28449672
    %v732 = vmul.f32 %v730, %v704
    %v733 = vmul.f32 %v731, %v719
    %v734 = vadd.f32 %v732, 0.2548296
    %v735 = vadd.f32 %v733, 0.2548296
    %v736 = vmul.f32 %v734, %v704
    %v737 = vmul.f32 %v735, %v719
    %v738 = vsub.f32 0.0, %v684
    %v739 = vsub.f32 0.0, %v685
    %v740 = vmul.f32 %v738, %v684
    %v741 = vmul.f32 %v739, %v685
    %v742 = vmul.f32 %v740, 1.442695
    %v743 = vpow.pop %v742
    %v744 = vmul.f32 %v741, 1.442695
    %v745 = vpow.pop %v744
    %v746 = vmul.f32 %v736, %v743
    %v747 = vmul.f32 %v737, %v745
    %v748 = vsub.f32 1.0, %v746
    %v749 = vsub.f32 1.0, %v747
    %vm750 = vcmp.ge.f32.partialorder %v682, 0.0
    %vm751 = vcmp.ge.f32.partialorder %v683, 0.0
    %v752 = vsub.f32 0.0, %v748
    %v753 = vsub.f32 0.0, %v749
    %v754 = vsel %vm750, %v748, %v752
    %v755 = vsel %vm751, %v749, %v753
    %v756 = vadd.f32 %v754, 1.0
    %v757 = vadd.f32 %v755, 1.0
    %v758 = vmul.f32 %v680, %v756
    %v759 = vmul.f32 %v681, %v757
    %v760 = vld [vmem:[%s13] sm:$0x1]
    %v762 = vperm.slane %v760, 0
    %vm764 = vcmask 523264
    %v766 = vsel %vm764, %v758, 0
    %v769 = vsel %vm764, %v759, 0
    %771 = vmatpush.msra.mxu0 0.0
    %772 = vmatpush.msra.mxu0 0.0
    %773 = vmatpush.msra.mxu0 0.0
    %774 = vmatpush.msra.mxu0 0.0
    %775 = vmatpush.msra.mxu0 0.0
    %776 = vmatpush.msra.mxu0 0.0
    %777 = vmatpush.msra.mxu0 0.0
    %778 = vmatpush.msra.mxu0 0.0
    %779 = vmatpush.msra.mxu0 %v196
    %780 = vmatpush.msra.mxu0 %v195
    %781 = vmatpush.msra.mxu0 %v194
    %782 = vmatpush.msra.mxu0 %v193
    %783 = vmatpush.msra.mxu0 %v192
    %784 = vmatpush.msra.mxu0 %v191
    %785 = vmatpush.msra.mxu0 %v190
    %786 = vmatpush.msra.mxu0 %v189
    %787 = vmatmul.f32.gmra.mxu0 %v766
    %v788 = vpop.f32.mrf.mxu0
    %v789 = vadd.f32 %v762, %v788
    %790 = vmatmul.f32.gmra.mxu0 %v769
    %v791 = vpop.f32.mrf.mxu0
    %v792 = vadd.f32 %v762, %v791
    %793 = vdwg.mxu0
    %v794 = vadd.f32 %v789, %v645
    %v795 = vadd.f32 %v792, %v646
    %v796 = vld [vmem:[%s14] sm:$0x1]
    %v797 = vld [vmem:[%s15] sm:$0x1]
    %v798 = vsel %vm111, %v794, 0.0
    %799 = vadd.xlane.f32.xlu0 %v798
    %v800 = vpop.xlane.xlu0 %799
    %v801 = vsel %vm111, %v795, 0.0
    %802 = vadd.xlane.f32.xlu0 %v801
    %v803 = vpop.xlane.xlu0 %802
    %v804 = vmul.f32 %v800, %v124
    %v805 = vmul.f32 %v803, %v124
    %v806 = vsub.f32 %v794, %v804
    %v807 = vsub.f32 %v795, %v805
    %v808 = vmul.f32 %v806, %v806
    %v809 = vmul.f32 %v807, %v807
    %v810 = vsel %vm111, %v808, 0.0
    %811 = vadd.xlane.f32.xlu0 %v810
    %v812 = vpop.xlane.xlu0 %811
    %v813 = vsel %vm111, %v809, 0.0
    %814 = vadd.xlane.f32.xlu0 %v813
    %v815 = vpop.xlane.xlu0 %814
    %v816 = vmul.f32 %v812, %v124
    %v817 = vmul.f32 %v815, %v124
    %v818 = vadd.f32 %v816, 1e-12
    %v819 = vadd.f32 %v817, 1e-12
    %v820 = vrsqrt.pop %v818
    %v821 = vmul.f32 %v820, %v818
    %v822 = vmul.f32 %v821, %v820
    %v823 = vmul.f32 0.5, %v822
    %v824 = vsub.f32 1.5, %v823
    %v825 = vmul.f32 %v820, %v824
    %vm826 = vweird.f32 %v818
    %vm827 = vweird.f32 %v820
    %vm828 = vmor %vm826, %vm827
    %v829 = vsel %vm828, %v820, %v825
    %v830 = vrsqrt.pop %v819
    %v831 = vmul.f32 %v830, %v819
    %v832 = vmul.f32 %v831, %v830
    %v833 = vmul.f32 0.5, %v832
    %v834 = vsub.f32 1.5, %v833
    %v835 = vmul.f32 %v830, %v834
    %vm836 = vweird.f32 %v819
    %vm837 = vweird.f32 %v830
    %vm838 = vmor %vm836, %vm837
    %v839 = vsel %vm838, %v830, %v835
    %v840 = vmul.f32 %v806, %v829
    %v841 = vmul.f32 %v807, %v839
    %v843 = vperm.slane %v796, 0
    %v845 = vmul.f32 %v840, %v843
    %v846 = vmul.f32 %v841, %v843
    %v848 = vperm.slane %v797, 0
    %v850 = vadd.f32 %v845, %v848
    %v851 = vadd.f32 %v846, %v848
    %s852 = scalar_lea.vmem %s4, 32
    %v853 = vld [vmem:[%s852] sm:$0xff]
    %v854 = vld [vmem:[%s852 + $0x8] sm:$0xff]
    %v855 = vld [vmem:[%s852 + $0x10] sm:$0xff]
    %v856 = vld [vmem:[%s852 + $0x18] sm:$0xff]
    %s857 = scalar_lea.vmem %s5, 1
    %v858 = vld [vmem:[%s857] sm:$0x1]
    %s859 = scalar_lea.vmem [#allocation2], 32
    %v860 = vld [vmem:[%s859] sm:$0xff]
    %v861 = vld [vmem:[%s859 + $0x8] sm:$0xff]
    %v862 = vld [vmem:[%s859 + $0x10] sm:$0xff]
    %v863 = vld [vmem:[%s859 + $0x18] sm:$0xff]
    %s864 = scalar_lea.vmem [#allocation5], 32
    %v865 = vld [vmem:[%s864] sm:$0xff]
    %v866 = vld [vmem:[%s864 + $0x8] sm:$0xff]
    %v867 = vld [vmem:[%s864 + $0x10] sm:$0xff]
    %v868 = vld [vmem:[%s864 + $0x18] sm:$0xff]
    %s869 = scalar_lea.vmem %s12, 64
    %v870 = vld [vmem:[%s869] sm:$0xff]
    %v871 = vld [vmem:[%s869 + $0x8] sm:$0xff]
    %v872 = vld [vmem:[%s869 + $0x10] sm:$0xff]
    %v873 = vld [vmem:[%s869 + $0x18] sm:$0xff]
    %v874 = vld [vmem:[%s869 + $0x20] sm:$0xff]
    %v875 = vld [vmem:[%s869 + $0x28] sm:$0xff]
    %v876 = vld [vmem:[%s869 + $0x30] sm:$0xff]
    %v877 = vld [vmem:[%s869 + $0x38] sm:$0xff]
    %v879 = vperm.slane %v858, 0
    %v882 = vsel %vm111, %v850, 0
    %v885 = vsel %vm111, %v851, 0
    %887 = vmatpush.msra.mxu0 0.0
    %888 = vmatpush.msra.mxu0 0.0
    %889 = vmatpush.msra.mxu0 0.0
    %890 = vmatpush.msra.mxu0 0.0
    %891 = vmatpush.msra.mxu0 0.0
    %892 = vmatpush.msra.mxu0 0.0
    %893 = vmatpush.msra.mxu0 0.0
    %894 = vmatpush.msra.mxu0 0.0
    %895 = vmatpush.msra.mxu0 0.0
    %896 = vmatpush.msra.mxu0 0.0
    %897 = vmatpush.msra.mxu0 0.0
    %898 = vmatpush.msra.mxu0 0.0
    %899 = vmatpush.msra.mxu0 %v856
    %900 = vmatpush.msra.mxu0 %v855
    %901 = vmatpush.msra.mxu0 %v854
    %902 = vmatpush.msra.mxu0 %v853
    %903 = vmatmul.f32.gmra.mxu0 %v882
    %v904 = vpop.f32.mrf.mxu0
    %v905 = vadd.f32 %v879, %v904
    %906 = vmatmul.f32.gmra.mxu0 %v885
    %v907 = vpop.f32.mrf.mxu0
    %v908 = vadd.f32 %v879, %v907
    %909 = vdwg.mxu0
    %911 = vrot.lane.b32.xlu0 %v905, 96
    %v912 = vpop.permute.xlu0 %911
    %v913 = vsel %vm233, %v905, 0
    %v915 = vsel %vm233, %v912, 0
    %917 = vmatpush.xpose.msra.mxu0 0.0
    %918 = vmatpush.xpose.msra.mxu0 0.0
    %919 = vmatpush.xpose.msra.mxu0 0.0
    %920 = vmatpush.xpose.msra.mxu0 0.0
    %921 = vmatpush.xpose.msra.mxu0 0.0
    %922 = vmatpush.xpose.msra.mxu0 0.0
    %923 = vmatpush.xpose.msra.mxu0 0.0
    %924 = vmatpush.xpose.msra.mxu0 0.0
    %925 = vmatpush.xpose.msra.mxu0 0.0
    %926 = vmatpush.xpose.msra.mxu0 0.0
    %927 = vmatpush.xpose.msra.mxu0 0.0
    %928 = vmatpush.xpose.msra.mxu0 0.0
    %929 = vmatpush.xpose.msra.mxu0 0.0
    %930 = vmatpush.xpose.msra.mxu0 0.0
    %931 = vmatpush.xpose.msra.mxu0 0.0
    %932 = vmatpush.xpose.msra.mxu0 %v915
    %933 = vmatmul.f32.gmra.mxu0 %v913
    %v934 = vpop.f32.mrf.mxu0
    %v935 = vadd.f32 %v229, %v934
    %936 = vdwg.mxu0
    %v937 = vsel %vm258, %v935, -inf
    %938 = vmax.xlane.f32.xlu0 %v937
    %v939 = vpop.xlane.xlu0 %938
    %v940 = vsub.f32 %v935, %v939
    %v941 = vmul.f32 %v940, 1.442695
    %v942 = vpow.pop %v941
    %v943 = vsel %vm258, %v942, 0.0
    %944 = vadd.xlane.f32.xlu0 %v943
    %v945 = vpop.xlane.xlu0 %944
    %v946 = vrcp.pop %v945
    %v947 = vmul.f32 %v942, %v946
    %948 = vrot.lane.b32.xlu0 %v905, 64
    %v949 = vpop.permute.xlu0 %948
    %v952 = vsel %vm258, %v947, 0
    %954 = vmatpush.msra.mxu0 0.0
    %955 = vmatpush.msra.mxu0 0.0
    %956 = vmatpush.msra.mxu0 0.0
    %957 = vmatpush.msra.mxu0 0.0
    %958 = vmatpush.msra.mxu0 0.0
    %959 = vmatpush.msra.mxu0 0.0
    %960 = vmatpush.msra.mxu0 0.0
    %961 = vmatpush.msra.mxu0 0.0
    %962 = vmatpush.msra.mxu0 0.0
    %963 = vmatpush.msra.mxu0 0.0
    %964 = vmatpush.msra.mxu0 0.0
    %965 = vmatpush.msra.mxu0 0.0
    %966 = vmatpush.msra.mxu0 0.0
    %967 = vmatpush.msra.mxu0 0.0
    %968 = vmatpush.msra.mxu0 0.0
    %969 = vmatpush.msra.mxu0 %v949
    %970 = vmatmul.f32.gmra.mxu0 %v952
    %v971 = vpop.f32.mrf.mxu0
    %v972 = vadd.f32 0.0, %v971
    %973 = vdwg.mxu0
    %974 = vrot.lane.b32.xlu0 %v905, 112
    %v975 = vpop.permute.xlu0 %974
    %976 = vrot.lane.b32.xlu0 %v905, 80
    %v977 = vpop.permute.xlu0 %976
    %v978 = vsel %vm233, %v975, 0
    %v980 = vsel %vm233, %v977, 0
    %982 = vmatpush.xpose.msra.mxu0 0.0
    %983 = vmatpush.xpose.msra.mxu0 0.0
    %984 = vmatpush.xpose.msra.mxu0 0.0
    %985 = vmatpush.xpose.msra.mxu0 0.0
    %986 = vmatpush.xpose.msra.mxu0 0.0
    %987 = vmatpush.xpose.msra.mxu0 0.0
    %988 = vmatpush.xpose.msra.mxu0 0.0
    %989 = vmatpush.xpose.msra.mxu0 0.0
    %990 = vmatpush.xpose.msra.mxu0 0.0
    %991 = vmatpush.xpose.msra.mxu0 0.0
    %992 = vmatpush.xpose.msra.mxu0 0.0
    %993 = vmatpush.xpose.msra.mxu0 0.0
    %994 = vmatpush.xpose.msra.mxu0 0.0
    %995 = vmatpush.xpose.msra.mxu0 0.0
    %996 = vmatpush.xpose.msra.mxu0 0.0
    %997 = vmatpush.xpose.msra.mxu0 %v980
    %998 = vmatmul.f32.gmra.mxu0 %v978
    %v999 = vpop.f32.mrf.mxu0
    %v1000 = vadd.f32 %v229, %v999
    %1001 = vdwg.mxu0
    %v1002 = vsel %vm258, %v1000, -inf
    %1003 = vmax.xlane.f32.xlu0 %v1002
    %v1004 = vpop.xlane.xlu0 %1003
    %v1005 = vsub.f32 %v1000, %v1004
    %v1006 = vmul.f32 %v1005, 1.442695
    %v1007 = vpow.pop %v1006
    %v1008 = vsel %vm258, %v1007, 0.0
    %1009 = vadd.xlane.f32.xlu0 %v1008
    %v1010 = vpop.xlane.xlu0 %1009
    %v1011 = vrcp.pop %v1010
    %v1012 = vmul.f32 %v1007, %v1011
    %1013 = vrot.lane.b32.xlu0 %v905, 48
    %v1014 = vpop.permute.xlu0 %1013
    %v1017 = vsel %vm258, %v1012, 0
    %1019 = vmatpush.msra.mxu0 0.0
    %1020 = vmatpush.msra.mxu0 0.0
    %1021 = vmatpush.msra.mxu0 0.0
    %1022 = vmatpush.msra.mxu0 0.0
    %1023 = vmatpush.msra.mxu0 0.0
    %1024 = vmatpush.msra.mxu0 0.0
    %1025 = vmatpush.msra.mxu0 0.0
    %1026 = vmatpush.msra.mxu0 0.0
    %1027 = vmatpush.msra.mxu0 0.0
    %1028 = vmatpush.msra.mxu0 0.0
    %1029 = vmatpush.msra.mxu0 0.0
    %1030 = vmatpush.msra.mxu0 0.0
    %1031 = vmatpush.msra.mxu0 0.0
    %1032 = vmatpush.msra.mxu0 0.0
    %1033 = vmatpush.msra.mxu0 0.0
    %1034 = vmatpush.msra.mxu0 %v1014
    %1035 = vmatmul.f32.gmra.mxu0 %v1017
    %v1036 = vpop.f32.mrf.mxu0
    %v1037 = vadd.f32 0.0, %v1036
    %1038 = vdwg.mxu0
    %v1040 = vsel %vm233, %v1037, 0
    %1042 = vmatpush.msra.mxu0 0.0
    %1043 = vmatpush.msra.mxu0 0.0
    %1044 = vmatpush.msra.mxu0 0.0
    %1045 = vmatpush.msra.mxu0 0.0
    %1046 = vmatpush.msra.mxu0 0.0
    %1047 = vmatpush.msra.mxu0 0.0
    %1048 = vmatpush.msra.mxu0 0.0
    %1049 = vmatpush.msra.mxu0 0.0
    %1050 = vmatpush.msra.mxu0 0.0
    %1051 = vmatpush.msra.mxu0 0.0
    %1052 = vmatpush.msra.mxu0 0.0
    %1053 = vmatpush.msra.mxu0 0.0
    %1054 = vmatpush.msra.mxu0 0.0
    %1055 = vmatpush.msra.mxu0 0.0
    %1056 = vmatpush.msra.mxu0 %v863
    %1057 = vmatpush.msra.mxu0 %v862
    %1058 = vmatmul.f32.gmra.mxu0 %v1040
    %v1059 = vpop.f32.mrf.mxu0
    %v1060 = vadd.f32 0.0, %v1059
    %1061 = vdwg.mxu0
    %v1063 = vsel %vm233, %v972, 0
    %1065 = vmatpush.msra.mxu0 0.0
    %1066 = vmatpush.msra.mxu0 0.0
    %1067 = vmatpush.msra.mxu0 0.0
    %1068 = vmatpush.msra.mxu0 0.0
    %1069 = vmatpush.msra.mxu0 0.0
    %1070 = vmatpush.msra.mxu0 0.0
    %1071 = vmatpush.msra.mxu0 0.0
    %1072 = vmatpush.msra.mxu0 0.0
    %1073 = vmatpush.msra.mxu0 0.0
    %1074 = vmatpush.msra.mxu0 0.0
    %1075 = vmatpush.msra.mxu0 0.0
    %1076 = vmatpush.msra.mxu0 0.0
    %1077 = vmatpush.msra.mxu0 0.0
    %1078 = vmatpush.msra.mxu0 0.0
    %1079 = vmatpush.msra.mxu0 %v861
    %1080 = vmatpush.msra.mxu0 %v860
    %1081 = vmatmul.f32.gmra.mxu0 %v1063
    %v1082 = vpop.f32.mrf.mxu0
    %v1083 = vadd.f32 %v1060, %v1082
    %1084 = vdwg.mxu0
    %1086 = vrot.lane.b32.xlu0 %v908, 96
    %v1087 = vpop.permute.xlu0 %1086
    %v1088 = vsel %vm233, %v908, 0
    %v1090 = vsel %vm233, %v1087, 0
    %1092 = vmatpush.xpose.msra.mxu0 0.0
    %1093 = vmatpush.xpose.msra.mxu0 0.0
    %1094 = vmatpush.xpose.msra.mxu0 0.0
    %1095 = vmatpush.xpose.msra.mxu0 0.0
    %1096 = vmatpush.xpose.msra.mxu0 0.0
    %1097 = vmatpush.xpose.msra.mxu0 0.0
    %1098 = vmatpush.xpose.msra.mxu0 0.0
    %1099 = vmatpush.xpose.msra.mxu0 0.0
    %1100 = vmatpush.xpose.msra.mxu0 0.0
    %1101 = vmatpush.xpose.msra.mxu0 0.0
    %1102 = vmatpush.xpose.msra.mxu0 0.0
    %1103 = vmatpush.xpose.msra.mxu0 0.0
    %1104 = vmatpush.xpose.msra.mxu0 0.0
    %1105 = vmatpush.xpose.msra.mxu0 0.0
    %1106 = vmatpush.xpose.msra.mxu0 0.0
    %1107 = vmatpush.xpose.msra.mxu0 %v1090
    %1108 = vmatmul.f32.gmra.mxu0 %v1088
    %v1109 = vpop.f32.mrf.mxu0
    %v1110 = vadd.f32 %v407, %v1109
    %1111 = vdwg.mxu0
    %v1112 = vsel %vm258, %v1110, -inf
    %1113 = vmax.xlane.f32.xlu0 %v1112
    %v1114 = vpop.xlane.xlu0 %1113
    %v1115 = vsub.f32 %v1110, %v1114
    %v1116 = vmul.f32 %v1115, 1.442695
    %v1117 = vpow.pop %v1116
    %v1118 = vsel %vm258, %v1117, 0.0
    %1119 = vadd.xlane.f32.xlu0 %v1118
    %v1120 = vpop.xlane.xlu0 %1119
    %v1121 = vrcp.pop %v1120
    %v1122 = vmul.f32 %v1117, %v1121
    %1123 = vrot.lane.b32.xlu0 %v908, 64
    %v1124 = vpop.permute.xlu0 %1123
    %v1127 = vsel %vm258, %v1122, 0
    %1129 = vmatpush.msra.mxu0 0.0
    %1130 = vmatpush.msra.mxu0 0.0
    %1131 = vmatpush.msra.mxu0 0.0
    %1132 = vmatpush.msra.mxu0 0.0
    %1133 = vmatpush.msra.mxu0 0.0
    %1134 = vmatpush.msra.mxu0 0.0
    %1135 = vmatpush.msra.mxu0 0.0
    %1136 = vmatpush.msra.mxu0 0.0
    %1137 = vmatpush.msra.mxu0 0.0
    %1138 = vmatpush.msra.mxu0 0.0
    %1139 = vmatpush.msra.mxu0 0.0
    %1140 = vmatpush.msra.mxu0 0.0
    %1141 = vmatpush.msra.mxu0 0.0
    %1142 = vmatpush.msra.mxu0 0.0
    %1143 = vmatpush.msra.mxu0 0.0
    %1144 = vmatpush.msra.mxu0 %v1124
    %1145 = vmatmul.f32.gmra.mxu0 %v1127
    %v1146 = vpop.f32.mrf.mxu0
    %v1147 = vadd.f32 0.0, %v1146
    %1148 = vdwg.mxu0
    %1149 = vrot.lane.b32.xlu0 %v908, 112
    %v1150 = vpop.permute.xlu0 %1149
    %1151 = vrot.lane.b32.xlu0 %v908, 80
    %v1152 = vpop.permute.xlu0 %1151
    %v1153 = vsel %vm233, %v1150, 0
    %v1155 = vsel %vm233, %v1152, 0
    %1157 = vmatpush.xpose.msra.mxu0 0.0
    %1158 = vmatpush.xpose.msra.mxu0 0.0
    %1159 = vmatpush.xpose.msra.mxu0 0.0
    %1160 = vmatpush.xpose.msra.mxu0 0.0
    %1161 = vmatpush.xpose.msra.mxu0 0.0
    %1162 = vmatpush.xpose.msra.mxu0 0.0
    %1163 = vmatpush.xpose.msra.mxu0 0.0
    %1164 = vmatpush.xpose.msra.mxu0 0.0
    %1165 = vmatpush.xpose.msra.mxu0 0.0
    %1166 = vmatpush.xpose.msra.mxu0 0.0
    %1167 = vmatpush.xpose.msra.mxu0 0.0
    %1168 = vmatpush.xpose.msra.mxu0 0.0
    %1169 = vmatpush.xpose.msra.mxu0 0.0
    %1170 = vmatpush.xpose.msra.mxu0 0.0
    %1171 = vmatpush.xpose.msra.mxu0 0.0
    %1172 = vmatpush.xpose.msra.mxu0 %v1155
    %1173 = vmatmul.f32.gmra.mxu0 %v1153
    %v1174 = vpop.f32.mrf.mxu0
    %v1175 = vadd.f32 %v407, %v1174
    %1176 = vdwg.mxu0
    %v1177 = vsel %vm258, %v1175, -inf
    %1178 = vmax.xlane.f32.xlu0 %v1177
    %v1179 = vpop.xlane.xlu0 %1178
    %v1180 = vsub.f32 %v1175, %v1179
    %v1181 = vmul.f32 %v1180, 1.442695
    %v1182 = vpow.pop %v1181
    %v1183 = vsel %vm258, %v1182, 0.0
    %1184 = vadd.xlane.f32.xlu0 %v1183
    %v1185 = vpop.xlane.xlu0 %1184
    %v1186 = vrcp.pop %v1185
    %v1187 = vmul.f32 %v1182, %v1186
    %1188 = vrot.lane.b32.xlu0 %v908, 48
    %v1189 = vpop.permute.xlu0 %1188
    %v1192 = vsel %vm258, %v1187, 0
    %1194 = vmatpush.msra.mxu0 0.0
    %1195 = vmatpush.msra.mxu0 0.0
    %1196 = vmatpush.msra.mxu0 0.0
    %1197 = vmatpush.msra.mxu0 0.0
    %1198 = vmatpush.msra.mxu0 0.0
    %1199 = vmatpush.msra.mxu0 0.0
    %1200 = vmatpush.msra.mxu0 0.0
    %1201 = vmatpush.msra.mxu0 0.0
    %1202 = vmatpush.msra.mxu0 0.0
    %1203 = vmatpush.msra.mxu0 0.0
    %1204 = vmatpush.msra.mxu0 0.0
    %1205 = vmatpush.msra.mxu0 0.0
    %1206 = vmatpush.msra.mxu0 0.0
    %1207 = vmatpush.msra.mxu0 0.0
    %1208 = vmatpush.msra.mxu0 0.0
    %1209 = vmatpush.msra.mxu0 %v1189
    %1210 = vmatmul.f32.gmra.mxu0 %v1192
    %v1211 = vpop.f32.mrf.mxu0
    %v1212 = vadd.f32 0.0, %v1211
    %1213 = vdwg.mxu0
    %v1215 = vsel %vm233, %v1212, 0
    %1217 = vmatpush.msra.mxu0 0.0
    %1218 = vmatpush.msra.mxu0 0.0
    %1219 = vmatpush.msra.mxu0 0.0
    %1220 = vmatpush.msra.mxu0 0.0
    %1221 = vmatpush.msra.mxu0 0.0
    %1222 = vmatpush.msra.mxu0 0.0
    %1223 = vmatpush.msra.mxu0 0.0
    %1224 = vmatpush.msra.mxu0 0.0
    %1225 = vmatpush.msra.mxu0 0.0
    %1226 = vmatpush.msra.mxu0 0.0
    %1227 = vmatpush.msra.mxu0 0.0
    %1228 = vmatpush.msra.mxu0 0.0
    %1229 = vmatpush.msra.mxu0 0.0
    %1230 = vmatpush.msra.mxu0 0.0
    %1231 = vmatpush.msra.mxu0 %v863
    %1232 = vmatpush.msra.mxu0 %v862
    %1233 = vmatmul.f32.gmra.mxu0 %v1215
    %v1234 = vpop.f32.mrf.mxu0
    %v1235 = vadd.f32 0.0, %v1234
    %1236 = vdwg.mxu0
    %v1238 = vsel %vm233, %v1147, 0
    %1240 = vmatpush.msra.mxu0 0.0
    %1241 = vmatpush.msra.mxu0 0.0
    %1242 = vmatpush.msra.mxu0 0.0
    %1243 = vmatpush.msra.mxu0 0.0
    %1244 = vmatpush.msra.mxu0 0.0
    %1245 = vmatpush.msra.mxu0 0.0
    %1246 = vmatpush.msra.mxu0 0.0
    %1247 = vmatpush.msra.mxu0 0.0
    %1248 = vmatpush.msra.mxu0 0.0
    %1249 = vmatpush.msra.mxu0 0.0
    %1250 = vmatpush.msra.mxu0 0.0
    %1251 = vmatpush.msra.mxu0 0.0
    %1252 = vmatpush.msra.mxu0 0.0
    %1253 = vmatpush.msra.mxu0 0.0
    %1254 = vmatpush.msra.mxu0 %v861
    %1255 = vmatpush.msra.mxu0 %v860
    %1256 = vmatmul.f32.gmra.mxu0 %v1238
    %v1257 = vpop.f32.mrf.mxu0
    %v1258 = vadd.f32 %v1235, %v1257
    %1259 = vdwg.mxu0
    %s1260 = scalar_lea.vmem %s7, 1
    %v1261 = vld [vmem:[%s1260] sm:$0x1]
    %v1263 = vperm.slane %v1261, 0
    %v1265 = vadd.f32 %v1083, %v1263
    %v1266 = vadd.f32 %v1258, %v1263
    %v1267 = vadd.f32 %v1265, %v850
    %v1268 = vadd.f32 %v1266, %v851
    %s1269 = scalar_lea.vmem %s8, 1
    %v1270 = vld [vmem:[%s1269] sm:$0x1]
    %s1271 = scalar_lea.vmem %s9, 1
    %v1272 = vld [vmem:[%s1271] sm:$0x1]
    %v1273 = vsel %vm111, %v1267, 0.0
    %1274 = vadd.xlane.f32.xlu0 %v1273
    %v1275 = vpop.xlane.xlu0 %1274
    %v1276 = vsel %vm111, %v1268, 0.0
    %1277 = vadd.xlane.f32.xlu0 %v1276
    %v1278 = vpop.xlane.xlu0 %1277
    %v1279 = vmul.f32 %v1275, %v124
    %v1280 = vmul.f32 %v1278, %v124
    %v1281 = vsub.f32 %v1267, %v1279
    %v1282 = vsub.f32 %v1268, %v1280
    %v1283 = vmul.f32 %v1281, %v1281
    %v1284 = vmul.f32 %v1282, %v1282
    %v1285 = vsel %vm111, %v1283, 0.0
    %1286 = vadd.xlane.f32.xlu0 %v1285
    %v1287 = vpop.xlane.xlu0 %1286
    %v1288 = vsel %vm111, %v1284, 0.0
    %1289 = vadd.xlane.f32.xlu0 %v1288
    %v1290 = vpop.xlane.xlu0 %1289
    %v1291 = vmul.f32 %v1287, %v124
    %v1292 = vmul.f32 %v1290, %v124
    %v1293 = vadd.f32 %v1291, 1e-12
    %v1294 = vadd.f32 %v1292, 1e-12
    %v1295 = vrsqrt.pop %v1293
    %v1296 = vmul.f32 %v1295, %v1293
    %v1297 = vmul.f32 %v1296, %v1295
    %v1298 = vmul.f32 0.5, %v1297
    %v1299 = vsub.f32 1.5, %v1298
    %v1300 = vmul.f32 %v1295, %v1299
    %vm1301 = vweird.f32 %v1293
    %vm1302 = vweird.f32 %v1295
    %vm1303 = vmor %vm1301, %vm1302
    %v1304 = vsel %vm1303, %v1295, %v1300
    %v1305 = vrsqrt.pop %v1294
    %v1306 = vmul.f32 %v1305, %v1294
    %v1307 = vmul.f32 %v1306, %v1305
    %v1308 = vmul.f32 0.5, %v1307
    %v1309 = vsub.f32 1.5, %v1308
    %v1310 = vmul.f32 %v1305, %v1309
    %vm1311 = vweird.f32 %v1294
    %vm1312 = vweird.f32 %v1305
    %vm1313 = vmor %vm1311, %vm1312
    %v1314 = vsel %vm1313, %v1305, %v1310
    %v1315 = vmul.f32 %v1281, %v1304
    %v1316 = vmul.f32 %v1282, %v1314
    %v1318 = vperm.slane %v1270, 0
    %v1320 = vmul.f32 %v1315, %v1318
    %v1321 = vmul.f32 %v1316, %v1318
    %v1323 = vperm.slane %v1272, 0
    %v1325 = vadd.f32 %v1320, %v1323
    %v1326 = vadd.f32 %v1321, %v1323
    %s1327 = scalar_lea.vmem %s11, 1
    %v1328 = vld [vmem:[%s1327] sm:$0x1]
    %v1330 = vperm.slane %v1328, 0
    %v1333 = vsel %vm111, %v1325, 0
    %v1336 = vsel %vm111, %v1326, 0
    %1338 = vmatpush.msra.mxu0 0.0
    %1339 = vmatpush.msra.mxu0 0.0
    %1340 = vmatpush.msra.mxu0 0.0
    %1341 = vmatpush.msra.mxu0 0.0
    %1342 = vmatpush.msra.mxu0 0.0
    %1343 = vmatpush.msra.mxu0 0.0
    %1344 = vmatpush.msra.mxu0 0.0
    %1345 = vmatpush.msra.mxu0 0.0
    %1346 = vmatpush.msra.mxu0 0.0
    %1347 = vmatpush.msra.mxu0 0.0
    %1348 = vmatpush.msra.mxu0 0.0
    %1349 = vmatpush.msra.mxu0 0.0
    %1350 = vmatpush.msra.mxu0 %v868
    %1351 = vmatpush.msra.mxu0 %v867
    %1352 = vmatpush.msra.mxu0 %v866
    %1353 = vmatpush.msra.mxu0 %v865
    %1354 = vmatmul.f32.gmra.mxu0 %v1333
    %v1355 = vpop.f32.mrf.mxu0
    %v1356 = vadd.f32 %v1330, %v1355
    %1357 = vmatmul.f32.gmra.mxu0 %v1336
    %v1358 = vpop.f32.mrf.mxu0
    %v1359 = vadd.f32 %v1330, %v1358
    %1360 = vdwg.mxu0
    %v1361 = vmul.f32 %v1356, 0.5
    %v1362 = vmul.f32 %v1359, 0.5
    %v1363 = vmul.f32 %v1356, 0.70710677
    %v1364 = vmul.f32 %v1359, 0.70710677
    %v1365 = vand.u32 2147483647, %v1363
    %v1366 = vand.u32 2147483647, %v1364
    %v1367 = vmul.f32 %v1365, 0.3275911
    %v1368 = vmul.f32 %v1366, 0.3275911
    %v1369 = vadd.f32 %v1367, 1.0
    %v1370 = vadd.f32 %v1368, 1.0
    %v1371 = vrcp.pop %v1369
    %v1372 = vmul.f32 %v1369, %v1371
    %v1373 = vsub.f32 1.0, %v1372
    %v1374 = vmul.f32 %v1371, %v1373
    %v1375 = vadd.f32 %v1371, %v1374
    %vm1376 = vweird.f32 %v1369
    %vm1377 = vweird.f32 %v1371
    %vm1378 = vmor %vm1376, %vm1377
    %v1379 = vsel %vm1378, %v1371, %v1375
    %v1380 = vand.u32 2147483647, %v1369
    %vm1381 = vcmp.eq.f32.partialorder %v1380, 8.507059e+37
    %v1382 = vand.u32 %v1369, 2147483648
    %v1383 = vor.u32 1.1754944e-38, %v1382
    %v1384 = vsel %vm1381, %v1383, %v1379
    %v1385 = vmul.f32 1.0, %v1384
    %v1386 = vrcp.pop %v1370
    %v1387 = vmul.f32 %v1370, %v1386
    %v1388 = vsub.f32 1.0, %v1387
    %v1389 = vmul.f32 %v1386, %v1388
    %v1390 = vadd.f32 %v1386, %v1389
    %vm1391 = vweird.f32 %v1370
    %vm1392 = vweird.f32 %v1386
    %vm1393 = vmor %vm1391, %vm1392
    %v1394 = vsel %vm1393, %v1386, %v1390
    %v1395 = vand.u32 2147483647, %v1370
    %vm1396 = vcmp.eq.f32.partialorder %v1395, 8.507059e+37
    %v1397 = vand.u32 %v1370, 2147483648
    %v1398 = vor.u32 1.1754944e-38, %v1397
    %v1399 = vsel %vm1396, %v1398, %v1394
    %v1400 = vmul.f32 1.0, %v1399
    %v1401 = vmul.f32 %v1385, 1.0614054
    %v1402 = vmul.f32 %v1400, 1.0614054
    %v1403 = vadd.f32 %v1401, -1.4531521
    %v1404 = vadd.f32 %v1402, -1.4531521
    %v1405 = vmul.f32 %v1403, %v1385
    %v1406 = vmul.f32 %v1404, %v1400
    %v1407 = vadd.f32 %v1405, 1.4214138
    %v1408 = vadd.f32 %v1406, 1.4214138
    %v1409 = vmul.f32 %v1407, %v1385
    %v1410 = vmul.f32 %v1408, %v1400
    %v1411 = vadd.f32 %v1409, -0.28449672
    %v1412 = vadd.f32 %v1410, -0.28449672
    %v1413 = vmul.f32 %v1411, %v1385
    %v1414 = vmul.f32 %v1412, %v1400
    %v1415 = vadd.f32 %v1413, 0.2548296
    %v1416 = vadd.f32 %v1414, 0.2548296
    %v1417 = vmul.f32 %v1415, %v1385
    %v1418 = vmul.f32 %v1416, %v1400
    %v1419 = vsub.f32 0.0, %v1365
    %v1420 = vsub.f32 0.0, %v1366
    %v1421 = vmul.f32 %v1419, %v1365
    %v1422 = vmul.f32 %v1420, %v1366
    %v1423 = vmul.f32 %v1421, 1.442695
    %v1424 = vpow.pop %v1423
    %v1425 = vmul.f32 %v1422, 1.442695
    %v1426 = vpow.pop %v1425
    %v1427 = vmul.f32 %v1417, %v1424
    %v1428 = vmul.f32 %v1418, %v1426
    %v1429 = vsub.f32 1.0, %v1427
    %v1430 = vsub.f32 1.0, %v1428
    %vm1431 = vcmp.ge.f32.partialorder %v1363, 0.0
    %vm1432 = vcmp.ge.f32.partialorder %v1364, 0.0
    %v1433 = vsub.f32 0.0, %v1429
    %v1434 = vsub.f32 0.0, %v1430
    %v1435 = vsel %vm1431, %v1429, %v1433
    %v1436 = vsel %vm1432, %v1430, %v1434
    %v1437 = vadd.f32 %v1435, 1.0
    %v1438 = vadd.f32 %v1436, 1.0
    %v1439 = vmul.f32 %v1361, %v1437
    %v1440 = vmul.f32 %v1362, %v1438
    %s1441 = scalar_lea.vmem %s13, 1
    %v1442 = vld [vmem:[%s1441] sm:$0x1]
    %v1444 = vperm.slane %v1442, 0
    %v1447 = vsel %vm764, %v1439, 0
    %v1450 = vsel %vm764, %v1440, 0
    %1452 = vmatpush.msra.mxu0 0.0
    %1453 = vmatpush.msra.mxu0 0.0
    %1454 = vmatpush.msra.mxu0 0.0
    %1455 = vmatpush.msra.mxu0 0.0
    %1456 = vmatpush.msra.mxu0 0.0
    %1457 = vmatpush.msra.mxu0 0.0
    %1458 = vmatpush.msra.mxu0 0.0
    %1459 = vmatpush.msra.mxu0 0.0
    %1460 = vmatpush.msra.mxu0 %v877
    %1461 = vmatpush.msra.mxu0 %v876
    %1462 = vmatpush.msra.mxu0 %v875
    %1463 = vmatpush.msra.mxu0 %v874
    %1464 = vmatpush.msra.mxu0 %v873
    %1465 = vmatpush.msra.mxu0 %v872
    %1466 = vmatpush.msra.mxu0 %v871
    %1467 = vmatpush.msra.mxu0 %v870
    %1468 = vmatmul.f32.gmra.mxu0 %v1447
    %v1469 = vpop.f32.mrf.mxu0
    %v1470 = vadd.f32 %v1444, %v1469
    %1471 = vmatmul.f32.gmra.mxu0 %v1450
    %v1472 = vpop.f32.mrf.mxu0
    %v1473 = vadd.f32 %v1444, %v1472
    %1474 = vdwg.mxu0
    %v1475 = vadd.f32 %v1470, %v1325
    %v1476 = vadd.f32 %v1473, %v1326
    %s1477 = scalar_lea.vmem %s14, 1
    %v1478 = vld [vmem:[%s1477] sm:$0x1]
    %s1479 = scalar_lea.vmem %s15, 1
    %v1480 = vld [vmem:[%s1479] sm:$0x1]
    %v1481 = vsel %vm111, %v1475, 0.0
    %1482 = vadd.xlane.f32.xlu0 %v1481
    %v1483 = vpop.xlane.xlu0 %1482
    %v1484 = vsel %vm111, %v1476, 0.0
    %1485 = vadd.xlane.f32.xlu0 %v1484
    %v1486 = vpop.xlane.xlu0 %1485
    %v1487 = vmul.f32 %v1483, %v124
    %v1488 = vmul.f32 %v1486, %v124
    %v1489 = vsub.f32 %v1475, %v1487
    %v1490 = vsub.f32 %v1476, %v1488
    %v1491 = vmul.f32 %v1489, %v1489
    %v1492 = vmul.f32 %v1490, %v1490
    %v1493 = vsel %vm111, %v1491, 0.0
    %1494 = vadd.xlane.f32.xlu0 %v1493
    %v1495 = vpop.xlane.xlu0 %1494
    %v1496 = vsel %vm111, %v1492, 0.0
    %1497 = vadd.xlane.f32.xlu0 %v1496
    %v1498 = vpop.xlane.xlu0 %1497
    %v1499 = vmul.f32 %v1495, %v124
    %v1500 = vmul.f32 %v1498, %v124
    %v1501 = vadd.f32 %v1499, 1e-12
    %v1502 = vadd.f32 %v1500, 1e-12
    %v1503 = vrsqrt.pop %v1501
    %v1504 = vmul.f32 %v1503, %v1501
    %v1505 = vmul.f32 %v1504, %v1503
    %v1506 = vmul.f32 0.5, %v1505
    %v1507 = vsub.f32 1.5, %v1506
    %v1508 = vmul.f32 %v1503, %v1507
    %vm1509 = vweird.f32 %v1501
    %vm1510 = vweird.f32 %v1503
    %vm1511 = vmor %vm1509, %vm1510
    %v1512 = vsel %vm1511, %v1503, %v1508
    %v1513 = vrsqrt.pop %v1502
    %v1514 = vmul.f32 %v1513, %v1502
    %v1515 = vmul.f32 %v1514, %v1513
    %v1516 = vmul.f32 0.5, %v1515
    %v1517 = vsub.f32 1.5, %v1516
    %v1518 = vmul.f32 %v1513, %v1517
    %vm1519 = vweird.f32 %v1502
    %vm1520 = vweird.f32 %v1513
    %vm1521 = vmor %vm1519, %vm1520
    %v1522 = vsel %vm1521, %v1513, %v1518
    %v1523 = vmul.f32 %v1489, %v1512
    %v1524 = vmul.f32 %v1490, %v1522
    %v1526 = vperm.slane %v1478, 0
    %v1528 = vmul.f32 %v1523, %v1526
    %v1529 = vmul.f32 %v1524, %v1526
    %v1531 = vperm.slane %v1480, 0
    %v1533 = vadd.f32 %v1528, %v1531
    %v1534 = vadd.f32 %v1529, %v1531
    %v1535 = vld [vmem:[#allocation7] sm:$0xff]
    %v1536 = vld [vmem:[#allocation7 + $0x8] sm:$0xff]
    %v1537 = vld [vmem:[#allocation7 + $0x10] sm:$0xff]
    %v1538 = vld [vmem:[#allocation7 + $0x18] sm:$0xff]
    %v1539 = vld [vmem:[%s17] sm:$0x1]
    %v1541 = vsel %vm111, %v1533, 0
    %1543 = vmatpush.msra.mxu0 0.0
    %1544 = vmatpush.msra.mxu0 0.0
    %1545 = vmatpush.msra.mxu0 0.0
    %1546 = vmatpush.msra.mxu0 0.0
    %1547 = vmatpush.msra.mxu0 0.0
    %1548 = vmatpush.msra.mxu0 0.0
    %1549 = vmatpush.msra.mxu0 0.0
    %1550 = vmatpush.msra.mxu0 0.0
    %1551 = vmatpush.msra.mxu0 0.0
    %1552 = vmatpush.msra.mxu0 0.0
    %1553 = vmatpush.msra.mxu0 0.0
    %1554 = vmatpush.msra.mxu0 0.0
    %1555 = vmatpush.msra.mxu0 %v1538
    %1556 = vmatpush.msra.mxu0 %v1537
    %1557 = vmatpush.msra.mxu0 %v1536
    %1558 = vmatpush.msra.mxu0 %v1535
    %1559 = vmatmul.f32.gmra.mxu0 %v1541
    %v1560 = vpop.f32.mrf.mxu0
    %v1561 = vadd.f32 %v1539, %v1560
    %1562 = vdwg.mxu0
    %v1563 = vtanh.pop %v1561
    %vm1564 = vcmask 253952
    %1565 = vst.msk [vmem:[#allocation8] sm:$0x1] %vm1564, %v1563
    %v1567 = vsel %vm111, %v1534, 0
    %1569 = vmatpush.msra.mxu0 0.0
    %1570 = vmatpush.msra.mxu0 0.0
    %1571 = vmatpush.msra.mxu0 0.0
    %1572 = vmatpush.msra.mxu0 0.0
    %1573 = vmatpush.msra.mxu0 0.0
    %1574 = vmatpush.msra.mxu0 0.0
    %1575 = vmatpush.msra.mxu0 0.0
    %1576 = vmatpush.msra.mxu0 0.0
    %1577 = vmatpush.msra.mxu0 0.0
    %1578 = vmatpush.msra.mxu0 0.0
    %1579 = vmatpush.msra.mxu0 0.0
    %1580 = vmatpush.msra.mxu0 0.0
    %1581 = vmatpush.msra.mxu0 %v1538
    %1582 = vmatpush.msra.mxu0 %v1537
    %1583 = vmatpush.msra.mxu0 %v1536
    %1584 = vmatpush.msra.mxu0 %v1535
    %1585 = vmatmul.f32.gmra.mxu0 %v1567
    %v1586 = vpop.f32.mrf.mxu0
    %v1587 = vadd.f32 %v1539, %v1586
    %1588 = vdwg.mxu0
    %v1589 = vtanh.pop %v1587
    %1590 = vst.msk [vmem:[#allocation8 + $0x1] sm:$0x1] %vm1564, %v1589
    // Predicated region
    $region86: #{_lambda_.1} parent=1 // pred_check
      _
    $region87: #{_lambda_.1} parent=1 // pred_check_branch
      %1592 = sbr.rel (0) target = $region89
    $region88: #{_lambda_.1} parent=1 // pred_region
      %1594 = vsyncadd [#allocation4], 0
      %s1596 = sshll.u32 [#allocation8], 4
      %s1597 = int_to_ptr.vmem [resolvable:$true] %s1596
      %s1598 = sshll.u32 %s18, 4
      %s1599 = int_to_ptr.hbm [resolvable:$true] %s1598
      %1601 = dma.vmem_to_hbm [thread:$0]  %s1597, 32, %s1599, [#allocation4]
    $region89: #{_lambda_.1} parent=1 // pred_fallthru
      _
    // Predicated region
    $region90: #{_lambda_.1} parent=1 // pred_check
      _
    $region91: #{_lambda_.1} parent=1 // pred_check_branch
      %1603 = sbr.rel (0) target = $region93
    $region92: #{_lambda_.1} parent=1 // pred_region
      %1605 = dma.done [#allocation4], 32
    $region93: #{_lambda_.1} parent=1 // pred_fallthru
      _
    %1606 = vsyncpa [#allocation3], 1
    %1607 = vsyncpa [#allocation6], 1
    %1608 = vsyncpa [#allocation4], 1

</llo_original>
